<compile_context>
chip_gen: v6e
topology: v6e:2x2x1
jax: 0.10.0
libtpu: 0.0.40
codegen_flags: <defaults>
</compile_context>

<pallas_src>
import functools

import jax
import jax.numpy as jnp
import numpy as np
from jax.experimental import pallas as pl
from jax.experimental.pallas import tpu as pltpu

# Fixed RMNIST decoder configuration.
_LAT, _NDOM, _NCON = 8, 3, 5
_DIN = _LAT + _NDOM + _NCON          # 16 linear input features
_C0, _C1, _C2, _COUT = 16, 16, 8, 1  # channels after linear / conv1 / convT2 / convT3
_H0, _H1, _H2 = 7, 14, 28            # spatial sizes


# ----------------------------------------------------------------------------
# The single fused Pallas kernel
# ----------------------------------------------------------------------------
def _decoder_kernel(xcat_ref, waug_ref, t1_ref, b1_ref, t2_ref, b2_ref,
                    t3_ref, b3_ref, o_ref,
                    xaug_ref, pad9_ref, col7_ref, pad16_ref, col14_ref, *, batch):
    f32 = jnp.float32
    B = batch
    DA = _DIN + 1                 # 17: features + ones column (bias folded into W)
    W9 = 9 * _C0                  # 144: padded 7x7 row width (x-pad included); C0 == C1
    W16 = 16 * _C2                # 128: padded 14x14 row width

    # ---------------- Linear -------------------------------------------------
    # Block-diagonal LHS so one matmul emits the linear output already in row
    # layout: rows = (b, y), lanes = (x*C0 + c).  Bias rides on the ones column.
    xaug_ref[...] = jnp.zeros(xaug_ref.shape, f32)
    for b in range(B):
        for y in range(_H0):
            xaug_ref[pl.ds(b * _H0 + y, 1), pl.ds(y * DA, DA)] = xcat_ref[pl.ds(b, 1), :]
    h0 = jnp.dot(xaug_ref[...], waug_ref[...], preferred_element_type=f32)   # (B*7, 112)

    # ---------------- Conv2d 16->16, k3, pad1, ReLU --------------------------
    pad9_ref[...] = jnp.zeros(pad9_ref.shape, f32)            # zero pad ring
    for b in range(B):
        pad9_ref[pl.ds(b * 9 + 1, _H0), pl.ds(_C0, _H0 * _C0)] = h0[b * _H0:(b + 1) * _H0, :]
    for e in range(3):                                        # 3 shifted row blocks (ky)
        for b in range(B):
            col7_ref[pl.ds(b * _H0, _H0), pl.ds(e * W9, W9)] = \
                pad9_ref[pl.ds(b * 9 + e, _H0), :]
    h1 = jnp.dot(col7_ref[...], t1_ref[...], preferred_element_type=f32) + b1_ref[...]
    h1 = jnp.maximum(h1, 0.0)                                 # (B*7, 112)

    # ---------------- ConvTranspose2d 16->8, k4, s2, p1, ReLU ----------------
    # Both output-row parities and the stride-2 column interleave are folded
    # into the precomputed block-Toeplitz matrix t2 -> single matmul.
    # pad ring of pad9_ref is still zero; interior is fully overwritten.
    for b in range(B):
        pad9_ref[pl.ds(b * 9 + 1, _H0), pl.ds(_C1, _H0 * _C1)] = h1[b * _H0:(b + 1) * _H0, :]
    for e in range(3):
        for b in range(B):
            col7_ref[pl.ds(b * _H0, _H0), pl.ds(e * W9, W9)] = \
                pad9_ref[pl.ds(b * 9 + e, _H0), :]
    h2 = jnp.dot(col7_ref[...], t2_ref[...], preferred_element_type=f32) + b2_ref[...]
    h2 = jnp.maximum(h2, 0.0)      # (B*7, 224): rows (b, i), lanes (r*112 + ox*8 + co)

    # ---------------- ConvTranspose2d 8->1, k4, s2, p1, ReLU -----------------
    pad16_ref[...] = jnp.zeros(pad16_ref.shape, f32)
    for b in range(B):
        for i in range(_H0):
            for r in range(2):     # interleave the two row parities: oy = 2*i + r
                pad16_ref[pl.ds(b * 16 + 1 + 2 * i + r, 1), pl.ds(_C2, _H1 * _C2)] = \
                    h2[b * _H0 + i:b * _H0 + i + 1, r * _H1 * _C2:(r + 1) * _H1 * _C2]
    for e in range(3):
        for b in range(B):
            col14_ref[pl.ds(b * _H1, _H1), pl.ds(e * W16, W16)] = \
                pad16_ref[pl.ds(b * 16 + e, _H1), :]
    h3 = jnp.dot(col14_ref[...], t3_ref[...], preferred_element_type=f32) + b3_ref[...]
    o_ref[...] = jnp.maximum(h3, 0.0)   # (B*14, 56): rows (b, i), lanes (r*28 + ox)


# ----------------------------------------------------------------------------
# One-time weight preprocessing (hoisted out of the forward path)
# ----------------------------------------------------------------------------
def prepare_params(params):
    """Build the block-Toeplitz matmul operands consumed by the fused kernel."""
    lin_w = np.asarray(params["lin_w"], np.float32)   # (DIN, 49*C0), col = c*49 + y*7 + x
    lin_b = np.asarray(params["lin_b"], np.float32)
    w1 = np.asarray(params["w1"], np.float32)         # (3,3,C0,C1) HWIO
    b1 = np.asarray(params["b1"], np.float32)
    wt2 = np.asarray(params["wt2"], np.float32)       # (C1,C2,4,4) torch ConvTranspose2d
    b2 = np.asarray(params["b2"], np.float32)
    wt3 = np.asarray(params["wt3"], np.float32)       # (C2,COUT,4,4)
    b3 = np.asarray(params["b3"], np.float32)

    # Linear: reorder columns so output rows=(b,y), lanes=(x*C0+c); fold bias.
    wl = lin_w.reshape(_DIN, _C0, _H0, _H0).transpose(2, 0, 3, 1).reshape(_H0, _DIN, _H0 * _C0)
    bl = lin_b.reshape(_C0, _H0, _H0).transpose(1, 2, 0).reshape(_H0, 1, _H0 * _C0)
    w_aug = np.concatenate([wl, bl], axis=1).reshape(_H0 * (_DIN + 1), _H0 * _C0)   # (119,112)

    # Conv1 (3x3, pad 1): T1[ky*144 + (x+kx)*C0 + ci, x*C1 + co] = w1[ky,kx,ci,co]
    wp1 = 9 * _C0
    t1 = np.zeros((3 * wp1, _H0 * _C1), np.float32)
    for ky in range(3):
        for kx in range(3):
            for x in range(_H0):
                p = x + kx
                t1[ky * wp1 + p * _C0:ky * wp1 + (p + 1) * _C0,
                   x * _C1:(x + 1) * _C1] += w1[ky, kx]
    b1r = np.tile(b1, _H0)[None, :]

    # ConvT2 (4x4, s2, p1): equivalent conv kernel = flip spatial + swap channels,
    # then parity-decompose (ky = 2*dy + r, kx = 2*dx + s) into a Toeplitz matrix.
    w2c = np.flip(wt2, axis=(2, 3)).transpose(2, 3, 0, 1)     # (4,4,C1,C2)
    wp2 = 9 * _C1
    t2 = np.zeros((3 * wp2, 2 * _H1 * _C2), np.float32)
    for r in range(2):            # output-row parity (oy = 2*i + r)
        for dy in range(2):
            e = r + dy            # which shifted input-row block
            for s in range(2):    # output-col parity (ox = 2*j + s)
                for dx in range(2):
                    for j in range(_H0):
                        p = j + s + dx                      # padded input x position
                        ox = 2 * j + s
                        t2[e * wp2 + p * _C1:e * wp2 + (p + 1) * _C1,
                           r * _H1 * _C2 + ox * _C2:r * _H1 * _C2 + (ox + 1) * _C2] += \
                            w2c[2 * dy + r, 2 * dx + s]
    b2r = np.tile(b2, 2 * _H1)[None, :]

    # ConvT3 (4x4, s2, p1), 8 -> 1.
    w3c = np.flip(wt3, axis=(2, 3)).transpose(2, 3, 0, 1)     # (4,4,C2,COUT)
    wp3 = 16 * _C2
    t3 = np.zeros((3 * wp3, 2 * _H2 * _COUT), np.float32)
    for r in range(2):
        for dy in range(2):
            e = r + dy
            for s in range(2):
                for dx in range(2):
                    for j in range(_H1):
                        p = j + s + dx
                        ox = 2 * j + s
                        t3[e * wp3 + p * _C2:e * wp3 + (p + 1) * _C2,
                           r * _H2 * _COUT + ox * _COUT:r * _H2 * _COUT + (ox + 1) * _COUT] += \
                            w3c[2 * dy + r, 2 * dx + s]
    b3r = np.tile(b3, 2 * _H2)[None, :]

    return dict(w_aug=jnp.asarray(w_aug),
                t1=jnp.asarray(t1), b1r=jnp.asarray(b1r),
                t2=jnp.asarray(t2), b2r=jnp.asarray(b2r),
                t3=jnp.asarray(t3), b3r=jnp.asarray(b3r))


# ----------------------------------------------------------------------------
# Forward pass (single pallas_call)
# ----------------------------------------------------------------------------
@jax.jit
def decoder_forward(prep, codes, domains, contents):
    B = codes.shape[0]
    ones = jnp.ones((B, 1), jnp.float32)
    x_cat = jnp.concatenate([codes.astype(jnp.float32),
                             domains.astype(jnp.float32),
                             contents.astype(jnp.float32), ones], axis=1)   # (B, 17)

    kernel = functools.partial(_decoder_kernel, batch=B)

    def full(shape):
        return pl.BlockSpec(shape, lambda i: (0, 0))

    operands = (x_cat, prep["w_aug"], prep["t1"], prep["b1r"],
                prep["t2"], prep["b2r"], prep["t3"], prep["b3r"])
    out = pl.pallas_call(
        kernel,
        grid=(1,),
        in_specs=[full(op.shape) for op in operands],
        out_specs=full((B * _H1, 2 * _H2 * _COUT)),
        out_shape=jax.ShapeDtypeStruct((B * _H1, 2 * _H2 * _COUT), jnp.float32),
        scratch_shapes=[
            pltpu.VMEM((B * _H0, _H0 * (_DIN + 1)), jnp.float32),   # block-diag linear LHS
            pltpu.VMEM((B * 9, 9 * _C0), jnp.float32),              # padded 7x7 rows (reused)
            pltpu.VMEM((B * _H0, 3 * 9 * _C0), jnp.float32),        # 3 shifted row blocks (7x7)
            pltpu.VMEM((B * 16, 16 * _C2), jnp.float32),            # padded 14x14 rows
            pltpu.VMEM((B * _H1, 3 * 16 * _C2), jnp.float32),       # 3 shifted row blocks (14x14)
        ],
        compiler_params=pltpu.CompilerParams(dimension_semantics=("arbitrary",)),
    )(*operands)
    # rows=(b, i), lanes=(r*28 + ox)  ->  NCHW (B, 1, 28, 28) with oy = 2*i + r.
    return out.reshape(B, 1, _H2, _H2)          # valid because COUT == 1


# ----------------------------------------------------------------------------
# Pure-JAX reference (for correctness check), uses the original weight layout
# ----------------------------------------------------------------------------
def ref_forward(params, codes, domains, contents):
    dn = ("NHWC", "HWIO", "NHWC")
    x = jnp.concatenate([codes, domains, contents], axis=1)
    x = x @ params["lin_w"] + params["lin_b"]
    B = x.shape[0]
    ch0 = params["w1"].shape[2]
    x = x.reshape(B, ch0, 7, 7).transpose(0, 2, 3, 1)
    x = jax.lax.conv_general_dilated(
        x, params["w1"], (1, 1), [(1, 1), (1, 1)], dimension_numbers=dn) + params["b1"]
    x = jax.nn.relu(x)
    w2 = jnp.flip(params["wt2"], axis=(2, 3)).transpose(2, 3, 0, 1)
    x = jax.lax.conv_general_dilated(
        x, w2, (1, 1), [(2, 2), (2, 2)], lhs_dilation=(2, 2),
        dimension_numbers=dn) + params["b2"]
    x = jax.nn.relu(x)
    w3 = jnp.flip(params["wt3"], axis=(2, 3)).transpose(2, 3, 0, 1)
    x = jax.lax.conv_general_dilated(
        x, w3, (1, 1), [(2, 2), (2, 2)], lhs_dilation=(2, 2),
        dimension_numbers=dn) + params["b3"]
    x = jax.nn.relu(x)
    return x.transpose(0, 3, 1, 2)


# ----------------------------------------------------------------------------
# Deterministic parameter init (synthetic; shapes follow Decoder.__init__)
# ----------------------------------------------------------------------------
def init_params(key, latent_size, num_domains, num_contents, out_channels, C):
    din = latent_size + num_domains + num_contents
    ch0, ch1, ch2 = out_channels
    ks = jax.random.split(key, 8)

    def nrm(k, shape, scale=0.1):
        return (scale * jax.random.normal(k, shape)).astype(jnp.float32)

    return dict(
        lin_w=nrm(ks[0], (din, 49 * ch0)),        # Linear weight (transposed vs torch)
        lin_b=nrm(ks[1], (49 * ch0,)),
        w1=nrm(ks[2], (3, 3, ch0, ch1)),          # Conv2d weight in HWIO
        b1=nrm(ks[3], (ch1,)),
        wt2=nrm(ks[4], (ch1, ch2, 4, 4)),         # ConvTranspose2d (Cin, Cout, K, K)
        b2=nrm(ks[5], (ch2,)),
        wt3=nrm(ks[6], (ch2, C, 4, 4)),
        b3=nrm(ks[7], (C,)),
    )


if __name__ == "__main__":
    B = 2
    latent_size, num_domains, num_contents = _LAT, _NDOM, _NCON
    out_channels = (_C0, _C1, _C2)
    C = _COUT

    key = jax.random.PRNGKey(0)
    kp, kc, kd, kk = jax.random.split(key, 4)
    params = init_params(kp, latent_size, num_domains, num_contents, out_channels, C)
    prep = prepare_params(params)                     # one-time weight preprocessing

    codes = jax.random.normal(kc, (B, latent_size), jnp.float32)
    domains = jax.nn.one_hot(
        jax.random.randint(kd, (B,), 0, num_domains), num_domains, dtype=jnp.float32)
    contents = jax.nn.one_hot(
        jax.random.randint(kk, (B,), 0, num_contents), num_contents, dtype=jnp.float32)

    out = jax.block_until_ready(decoder_forward(prep, codes, domains, contents))

    assert out.shape == (B, C, 28, 28), out.shape
    ref = ref_forward(params, codes, domains, contents)
    np.testing.assert_allclose(np.asarray(out), np.asarray(ref), rtol=1e-4, atol=1e-4)
    print("KERNEL_OK")
</pallas_src>

<mosaic_0001>
module attributes {stable_mosaic.version = 11 : i64} {
  func.func @_decoder_kernel(%arg0: i32, %arg1: memref<2x17xf32, #tpu.memory_space<vmem>>, %arg2: memref<119x112xf32, #tpu.memory_space<vmem>>, %arg3: memref<432x112xf32, #tpu.memory_space<vmem>>, %arg4: memref<1x112xf32, #tpu.memory_space<vmem>>, %arg5: memref<432x224xf32, #tpu.memory_space<vmem>>, %arg6: memref<1x224xf32, #tpu.memory_space<vmem>>, %arg7: memref<384x56xf32, #tpu.memory_space<vmem>>, %arg8: memref<1x56xf32, #tpu.memory_space<vmem>>, %arg9: memref<28x56xf32, #tpu.memory_space<vmem>>, %arg10: memref<14x119xf32, #tpu.memory_space<vmem>>, %arg11: memref<18x144xf32, #tpu.memory_space<vmem>>, %arg12: memref<14x432xf32, #tpu.memory_space<vmem>>, %arg13: memref<32x128xf32, #tpu.memory_space<vmem>>, %arg14: memref<28x384xf32, #tpu.memory_space<vmem>>) attributes {dimension_semantics = [#tpu.dimension_semantics<arbitrary>], iteration_bounds = array<i64: 1>, scalar_prefetch = 0 : i64, scratch_operands = 5 : i64, tpu.core_type = #tpu.core_type<tc>, window_params = [{pipeline_mode = #tpu.pipeline_mode<synchronous>, transform_indices = @transform_0, window_bounds = array<i64: 2, 17>}, {pipeline_mode = #tpu.pipeline_mode<synchronous>, transform_indices = @transform_1, window_bounds = array<i64: 119, 112>}, {pipeline_mode = #tpu.pipeline_mode<synchronous>, transform_indices = @transform_2, window_bounds = array<i64: 432, 112>}, {pipeline_mode = #tpu.pipeline_mode<synchronous>, transform_indices = @transform_3, window_bounds = array<i64: 1, 112>}, {pipeline_mode = #tpu.pipeline_mode<synchronous>, transform_indices = @transform_4, window_bounds = array<i64: 432, 224>}, {pipeline_mode = #tpu.pipeline_mode<synchronous>, transform_indices = @transform_5, window_bounds = array<i64: 1, 224>}, {pipeline_mode = #tpu.pipeline_mode<synchronous>, transform_indices = @transform_6, window_bounds = array<i64: 384, 56>}, {pipeline_mode = #tpu.pipeline_mode<synchronous>, transform_indices = @transform_7, window_bounds = array<i64: 1, 56>}, {pipeline_mode = #tpu.pipeline_mode<synchronous>, transform_indices = @transform_8, window_bounds = array<i64: 28, 56>}]} {
    %cst = arith.constant 0.000000e+00 : f32
    %0 = vector.broadcast %cst : f32 to vector<14x119xf32>
    %c0 = arith.constant 0 : index
    %c0_0 = arith.constant 0 : index
    %1 = vector.load %arg10[%c0, %c0_0] : memref<14x119xf32, #tpu.memory_space<vmem>>, vector<14x119xf32>
    tpu.vector_store %arg10[%c0, %c0_0], %0 {strides = array<i32>} : memref<14x119xf32, #tpu.memory_space<vmem>>, vector<14x119xf32>,
    %c0_1 = arith.constant 0 : index
    %c0_2 = arith.constant 0 : index
    %2 = vector.load %arg1[%c0_1, %c0_2] : memref<2x17xf32, #tpu.memory_space<vmem>>, vector<1x17xf32>
    %c0_3 = arith.constant 0 : index
    %c0_4 = arith.constant 0 : index
    %3 = vector.load %arg10[%c0_3, %c0_4] : memref<14x119xf32, #tpu.memory_space<vmem>>, vector<1x17xf32>
    tpu.vector_store %arg10[%c0_3, %c0_4], %2 {strides = array<i32>} : memref<14x119xf32, #tpu.memory_space<vmem>>, vector<1x17xf32>,
    %c0_5 = arith.constant 0 : index
    %c0_6 = arith.constant 0 : index
    %4 = vector.load %arg1[%c0_5, %c0_6] : memref<2x17xf32, #tpu.memory_space<vmem>>, vector<1x17xf32>
    %c1 = arith.constant 1 : index
    %c17 = arith.constant 17 : index
    %5 = vector.load %arg10[%c1, %c17] : memref<14x119xf32, #tpu.memory_space<vmem>>, vector<1x17xf32>
    tpu.vector_store %arg10[%c1, %c17], %4 {strides = array<i32>} : memref<14x119xf32, #tpu.memory_space<vmem>>, vector<1x17xf32>,
    %c0_7 = arith.constant 0 : index
    %c0_8 = arith.constant 0 : index
    %6 = vector.load %arg1[%c0_7, %c0_8] : memref<2x17xf32, #tpu.memory_space<vmem>>, vector<1x17xf32>
    %c2 = arith.constant 2 : index
    %c34 = arith.constant 34 : index
    %7 = vector.load %arg10[%c2, %c34] : memref<14x119xf32, #tpu.memory_space<vmem>>, vector<1x17xf32>
    tpu.vector_store %arg10[%c2, %c34], %6 {strides = array<i32>} : memref<14x119xf32, #tpu.memory_space<vmem>>, vector<1x17xf32>,
    %c0_9 = arith.constant 0 : index
    %c0_10 = arith.constant 0 : index
    %8 = vector.load %arg1[%c0_9, %c0_10] : memref<2x17xf32, #tpu.memory_space<vmem>>, vector<1x17xf32>
    %c3 = arith.constant 3 : index
    %c51 = arith.constant 51 : index
    %9 = vector.load %arg10[%c3, %c51] : memref<14x119xf32, #tpu.memory_space<vmem>>, vector<1x17xf32>
    tpu.vector_store %arg10[%c3, %c51], %8 {strides = array<i32>} : memref<14x119xf32, #tpu.memory_space<vmem>>, vector<1x17xf32>,
    %c0_11 = arith.constant 0 : index
    %c0_12 = arith.constant 0 : index
    %10 = vector.load %arg1[%c0_11, %c0_12] : memref<2x17xf32, #tpu.memory_space<vmem>>, vector<1x17xf32>
    %c4 = arith.constant 4 : index
    %c68 = arith.constant 68 : index
    %11 = vector.load %arg10[%c4, %c68] : memref<14x119xf32, #tpu.memory_space<vmem>>, vector<1x17xf32>
    tpu.vector_store %arg10[%c4, %c68], %10 {strides = array<i32>} : memref<14x119xf32, #tpu.memory_space<vmem>>, vector<1x17xf32>,
    %c0_13 = arith.constant 0 : index
    %c0_14 = arith.constant 0 : index
    %12 = vector.load %arg1[%c0_13, %c0_14] : memref<2x17xf32, #tpu.memory_space<vmem>>, vector<1x17xf32>
    %c5 = arith.constant 5 : index
    %c85 = arith.constant 85 : index
    %13 = vector.load %arg10[%c5, %c85] : memref<14x119xf32, #tpu.memory_space<vmem>>, vector<1x17xf32>
    tpu.vector_store %arg10[%c5, %c85], %12 {strides = array<i32>} : memref<14x119xf32, #tpu.memory_space<vmem>>, vector<1x17xf32>,
    %c0_15 = arith.constant 0 : index
    %c0_16 = arith.constant 0 : index
    %14 = vector.load %arg1[%c0_15, %c0_16] : memref<2x17xf32, #tpu.memory_space<vmem>>, vector<1x17xf32>
    %c6 = arith.constant 6 : index
    %c102 = arith.constant 102 : index
    %15 = vector.load %arg10[%c6, %c102] : memref<14x119xf32, #tpu.memory_space<vmem>>, vector<1x17xf32>
    tpu.vector_store %arg10[%c6, %c102], %14 {strides = array<i32>} : memref<14x119xf32, #tpu.memory_space<vmem>>, vector<1x17xf32>,
    %c1_17 = arith.constant 1 : index
    %c0_18 = arith.constant 0 : index
    %16 = vector.load %arg1[%c1_17, %c0_18] : memref<2x17xf32, #tpu.memory_space<vmem>>, vector<1x17xf32>
    %c7 = arith.constant 7 : index
    %c0_19 = arith.constant 0 : index
    %17 = vector.load %arg10[%c7, %c0_19] : memref<14x119xf32, #tpu.memory_space<vmem>>, vector<1x17xf32>
    tpu.vector_store %arg10[%c7, %c0_19], %16 {strides = array<i32>} : memref<14x119xf32, #tpu.memory_space<vmem>>, vector<1x17xf32>,
    %c1_20 = arith.constant 1 : index
    %c0_21 = arith.constant 0 : index
    %18 = vector.load %arg1[%c1_20, %c0_21] : memref<2x17xf32, #tpu.memory_space<vmem>>, vector<1x17xf32>
    %c8 = arith.constant 8 : index
    %c17_22 = arith.constant 17 : index
    %19 = vector.load %arg10[%c8, %c17_22] : memref<14x119xf32, #tpu.memory_space<vmem>>, vector<1x17xf32>
    tpu.vector_store %arg10[%c8, %c17_22], %18 {strides = array<i32>} : memref<14x119xf32, #tpu.memory_space<vmem>>, vector<1x17xf32>,
    %c1_23 = arith.constant 1 : index
    %c0_24 = arith.constant 0 : index
    %20 = vector.load %arg1[%c1_23, %c0_24] : memref<2x17xf32, #tpu.memory_space<vmem>>, vector<1x17xf32>
    %c9 = arith.constant 9 : index
    %c34_25 = arith.constant 34 : index
    %21 = vector.load %arg10[%c9, %c34_25] : memref<14x119xf32, #tpu.memory_space<vmem>>, vector<1x17xf32>
    tpu.vector_store %arg10[%c9, %c34_25], %20 {strides = array<i32>} : memref<14x119xf32, #tpu.memory_space<vmem>>, vector<1x17xf32>,
    %c1_26 = arith.constant 1 : index
    %c0_27 = arith.constant 0 : index
    %22 = vector.load %arg1[%c1_26, %c0_27] : memref<2x17xf32, #tpu.memory_space<vmem>>, vector<1x17xf32>
    %c10 = arith.constant 10 : index
    %c51_28 = arith.constant 51 : index
    %23 = vector.load %arg10[%c10, %c51_28] : memref<14x119xf32, #tpu.memory_space<vmem>>, vector<1x17xf32>
    tpu.vector_store %arg10[%c10, %c51_28], %22 {strides = array<i32>} : memref<14x119xf32, #tpu.memory_space<vmem>>, vector<1x17xf32>,
    %c1_29 = arith.constant 1 : index
    %c0_30 = arith.constant 0 : index
    %24 = vector.load %arg1[%c1_29, %c0_30] : memref<2x17xf32, #tpu.memory_space<vmem>>, vector<1x17xf32>
    %c11 = arith.constant 11 : index
    %c68_31 = arith.constant 68 : index
    %25 = vector.load %arg10[%c11, %c68_31] : memref<14x119xf32, #tpu.memory_space<vmem>>, vector<1x17xf32>
    tpu.vector_store %arg10[%c11, %c68_31], %24 {strides = array<i32>} : memref<14x119xf32, #tpu.memory_space<vmem>>, vector<1x17xf32>,
    %c1_32 = arith.constant 1 : index
    %c0_33 = arith.constant 0 : index
    %26 = vector.load %arg1[%c1_32, %c0_33] : memref<2x17xf32, #tpu.memory_space<vmem>>, vector<1x17xf32>
    %c12 = arith.constant 12 : index
    %c85_34 = arith.constant 85 : index
    %27 = vector.load %arg10[%c12, %c85_34] : memref<14x119xf32, #tpu.memory_space<vmem>>, vector<1x17xf32>
    tpu.vector_store %arg10[%c12, %c85_34], %26 {strides = array<i32>} : memref<14x119xf32, #tpu.memory_space<vmem>>, vector<1x17xf32>,
    %c1_35 = arith.constant 1 : index
    %c0_36 = arith.constant 0 : index
    %28 = vector.load %arg1[%c1_35, %c0_36] : memref<2x17xf32, #tpu.memory_space<vmem>>, vector<1x17xf32>
    %c13 = arith.constant 13 : index
    %c102_37 = arith.constant 102 : index
    %29 = vector.load %arg10[%c13, %c102_37] : memref<14x119xf32, #tpu.memory_space<vmem>>, vector<1x17xf32>
    tpu.vector_store %arg10[%c13, %c102_37], %28 {strides = array<i32>} : memref<14x119xf32, #tpu.memory_space<vmem>>, vector<1x17xf32>,
    %c0_38 = arith.constant 0 : index
    %c0_39 = arith.constant 0 : index
    %30 = vector.load %arg10[%c0_38, %c0_39] : memref<14x119xf32, #tpu.memory_space<vmem>>, vector<14x119xf32>
    %c0_40 = arith.constant 0 : index
    %c0_41 = arith.constant 0 : index
    %31 = vector.load %arg2[%c0_40, %c0_41] : memref<119x112xf32, #tpu.memory_space<vmem>>, vector<119x112xf32>
    %cst_42 = arith.constant dense<0.000000e+00> : vector<14x112xf32>
    %32 = tpu.matmul %30, %31, %cst_42 {dimension_numbers = #tpu.dot_dimension_numbers<[1], [0], [0], [1], [0, 0, 1, 1], [], []>} : vector<14x119xf32>, vector<119x112xf32>, vector<14x112xf32> -> vector<14x112xf32>
    %cst_43 = arith.constant 0.000000e+00 : f32
    %33 = vector.broadcast %cst_43 : f32 to vector<18x144xf32>
    %c0_44 = arith.constant 0 : index
    %c0_45 = arith.constant 0 : index
    %34 = vector.load %arg11[%c0_44, %c0_45] : memref<18x144xf32, #tpu.memory_space<vmem>>, vector<18x144xf32>
    tpu.vector_store %arg11[%c0_44, %c0_45], %33 {strides = array<i32>} : memref<18x144xf32, #tpu.memory_space<vmem>>, vector<18x144xf32>,
    %35 = vector.extract_strided_slice %32 {offsets = [0, 0], sizes = [7, 112], strides = [1, 1]} : vector<14x112xf32> to vector<7x112xf32>
    %c1_46 = arith.constant 1 : index
    %c16 = arith.constant 16 : index
    %36 = vector.load %arg11[%c1_46, %c16] : memref<18x144xf32, #tpu.memory_space<vmem>>, vector<7x112xf32>
    tpu.vector_store %arg11[%c1_46, %c16], %35 {strides = array<i32>} : memref<18x144xf32, #tpu.memory_space<vmem>>, vector<7x112xf32>,
    %37 = vector.extract_strided_slice %32 {offsets = [7, 0], sizes = [7, 112], strides = [1, 1]} : vector<14x112xf32> to vector<7x112xf32>
    %c10_47 = arith.constant 10 : index
    %c16_48 = arith.constant 16 : index
    %38 = vector.load %arg11[%c10_47, %c16_48] : memref<18x144xf32, #tpu.memory_space<vmem>>, vector<7x112xf32>
    tpu.vector_store %arg11[%c10_47, %c16_48], %37 {strides = array<i32>} : memref<18x144xf32, #tpu.memory_space<vmem>>, vector<7x112xf32>,
    %c0_49 = arith.constant 0 : index
    %c0_50 = arith.constant 0 : index
    %39 = vector.load %arg11[%c0_49, %c0_50] : memref<18x144xf32, #tpu.memory_space<vmem>>, vector<7x144xf32>
    %c0_51 = arith.constant 0 : index
    %c0_52 = arith.constant 0 : index
    %40 = vector.load %arg12[%c0_51, %c0_52] : memref<14x432xf32, #tpu.memory_space<vmem>>, vector<7x144xf32>
    tpu.vector_store %arg12[%c0_51, %c0_52], %39 {strides = array<i32>} : memref<14x432xf32, #tpu.memory_space<vmem>>, vector<7x144xf32>,
    %c9_53 = arith.constant 9 : index
    %c0_54 = arith.constant 0 : index
    %41 = vector.load %arg11[%c9_53, %c0_54] : memref<18x144xf32, #tpu.memory_space<vmem>>, vector<7x144xf32>
    %c7_55 = arith.constant 7 : index
    %c0_56 = arith.constant 0 : index
    %42 = vector.load %arg12[%c7_55, %c0_56] : memref<14x432xf32, #tpu.memory_space<vmem>>, vector<7x144xf32>
    tpu.vector_store %arg12[%c7_55, %c0_56], %41 {strides = array<i32>} : memref<14x432xf32, #tpu.memory_space<vmem>>, vector<7x144xf32>,
    %c1_57 = arith.constant 1 : index
    %c0_58 = arith.constant 0 : index
    %43 = vector.load %arg11[%c1_57, %c0_58] : memref<18x144xf32, #tpu.memory_space<vmem>>, vector<7x144xf32>
    %c0_59 = arith.constant 0 : index
    %c144 = arith.constant 144 : index
    %44 = vector.load %arg12[%c0_59, %c144] : memref<14x432xf32, #tpu.memory_space<vmem>>, vector<7x144xf32>
    tpu.vector_store %arg12[%c0_59, %c144], %43 {strides = array<i32>} : memref<14x432xf32, #tpu.memory_space<vmem>>, vector<7x144xf32>,
    %c10_60 = arith.constant 10 : index
    %c0_61 = arith.constant 0 : index
    %45 = vector.load %arg11[%c10_60, %c0_61] : memref<18x144xf32, #tpu.memory_space<vmem>>, vector<7x144xf32>
    %c7_62 = arith.constant 7 : index
    %c144_63 = arith.constant 144 : index
    %46 = vector.load %arg12[%c7_62, %c144_63] : memref<14x432xf32, #tpu.memory_space<vmem>>, vector<7x144xf32>
    tpu.vector_store %arg12[%c7_62, %c144_63], %45 {strides = array<i32>} : memref<14x432xf32, #tpu.memory_space<vmem>>, vector<7x144xf32>,
    %c2_64 = arith.constant 2 : index
    %c0_65 = arith.constant 0 : index
    %47 = vector.load %arg11[%c2_64, %c0_65] : memref<18x144xf32, #tpu.memory_space<vmem>>, vector<7x144xf32>
    %c0_66 = arith.constant 0 : index
    %c288 = arith.constant 288 : index
    %48 = vector.load %arg12[%c0_66, %c288] : memref<14x432xf32, #tpu.memory_space<vmem>>, vector<7x144xf32>
    tpu.vector_store %arg12[%c0_66, %c288], %47 {strides = array<i32>} : memref<14x432xf32, #tpu.memory_space<vmem>>, vector<7x144xf32>,
    %c11_67 = arith.constant 11 : index
    %c0_68 = arith.constant 0 : index
    %49 = vector.load %arg11[%c11_67, %c0_68] : memref<18x144xf32, #tpu.memory_space<vmem>>, vector<7x144xf32>
    %c7_69 = arith.constant 7 : index
    %c288_70 = arith.constant 288 : index
    %50 = vector.load %arg12[%c7_69, %c288_70] : memref<14x432xf32, #tpu.memory_space<vmem>>, vector<7x144xf32>
    tpu.vector_store %arg12[%c7_69, %c288_70], %49 {strides = array<i32>} : memref<14x432xf32, #tpu.memory_space<vmem>>, vector<7x144xf32>,
    %c0_71 = arith.constant 0 : index
    %c0_72 = arith.constant 0 : index
    %51 = vector.load %arg12[%c0_71, %c0_72] : memref<14x432xf32, #tpu.memory_space<vmem>>, vector<14x432xf32>
    %c0_73 = arith.constant 0 : index
    %c0_74 = arith.constant 0 : index
    %52 = vector.load %arg3[%c0_73, %c0_74] : memref<432x112xf32, #tpu.memory_space<vmem>>, vector<432x112xf32>
    %cst_75 = arith.constant dense<0.000000e+00> : vector<14x112xf32>
    %53 = tpu.matmul %51, %52, %cst_75 {dimension_numbers = #tpu.dot_dimension_numbers<[1], [0], [0], [1], [0, 0, 1, 1], [], []>} : vector<14x432xf32>, vector<432x112xf32>, vector<14x112xf32> -> vector<14x112xf32>
    %c0_76 = arith.constant 0 : index
    %c0_77 = arith.constant 0 : index
    %54 = vector.load %arg4[%c0_76, %c0_77] : memref<1x112xf32, #tpu.memory_space<vmem>>, vector<1x112xf32>
    %55 = vector.broadcast %54 : vector<1x112xf32> to vector<14x112xf32>
    %56 = arith.addf %53, %55 : vector<14x112xf32>
    %cst_78 = arith.constant 0.000000e+00 : f32
    %57 = vector.broadcast %cst_78 : f32 to vector<14x112xf32>
    %58 = arith.maximumf %56, %57 : vector<14x112xf32>
    %59 = vector.extract_strided_slice %58 {offsets = [0, 0], sizes = [7, 112], strides = [1, 1]} : vector<14x112xf32> to vector<7x112xf32>
    %c1_79 = arith.constant 1 : index
    %c16_80 = arith.constant 16 : index
    %60 = vector.load %arg11[%c1_79, %c16_80] : memref<18x144xf32, #tpu.memory_space<vmem>>, vector<7x112xf32>
    tpu.vector_store %arg11[%c1_79, %c16_80], %59 {strides = array<i32>} : memref<18x144xf32, #tpu.memory_space<vmem>>, vector<7x112xf32>,
    %61 = vector.extract_strided_slice %58 {offsets = [7, 0], sizes = [7, 112], strides = [1, 1]} : vector<14x112xf32> to vector<7x112xf32>
    %c10_81 = arith.constant 10 : index
    %c16_82 = arith.constant 16 : index
    %62 = vector.load %arg11[%c10_81, %c16_82] : memref<18x144xf32, #tpu.memory_space<vmem>>, vector<7x112xf32>
    tpu.vector_store %arg11[%c10_81, %c16_82], %61 {strides = array<i32>} : memref<18x144xf32, #tpu.memory_space<vmem>>, vector<7x112xf32>,
    %c0_83 = arith.constant 0 : index
    %c0_84 = arith.constant 0 : index
    %63 = vector.load %arg11[%c0_83, %c0_84] : memref<18x144xf32, #tpu.memory_space<vmem>>, vector<7x144xf32>
    %c0_85 = arith.constant 0 : index
    %c0_86 = arith.constant 0 : index
    %64 = vector.load %arg12[%c0_85, %c0_86] : memref<14x432xf32, #tpu.memory_space<vmem>>, vector<7x144xf32>
    tpu.vector_store %arg12[%c0_85, %c0_86], %63 {strides = array<i32>} : memref<14x432xf32, #tpu.memory_space<vmem>>, vector<7x144xf32>,
    %c9_87 = arith.constant 9 : index
    %c0_88 = arith.constant 0 : index
    %65 = vector.load %arg11[%c9_87, %c0_88] : memref<18x144xf32, #tpu.memory_space<vmem>>, vector<7x144xf32>
    %c7_89 = arith.constant 7 : index
    %c0_90 = arith.constant 0 : index
    %66 = vector.load %arg12[%c7_89, %c0_90] : memref<14x432xf32, #tpu.memory_space<vmem>>, vector<7x144xf32>
    tpu.vector_store %arg12[%c7_89, %c0_90], %65 {strides = array<i32>} : memref<14x432xf32, #tpu.memory_space<vmem>>, vector<7x144xf32>,
    %c1_91 = arith.constant 1 : index
    %c0_92 = arith.constant 0 : index
    %67 = vector.load %arg11[%c1_91, %c0_92] : memref<18x144xf32, #tpu.memory_space<vmem>>, vector<7x144xf32>
    %c0_93 = arith.constant 0 : index
    %c144_94 = arith.constant 144 : index
    %68 = vector.load %arg12[%c0_93, %c144_94] : memref<14x432xf32, #tpu.memory_space<vmem>>, vector<7x144xf32>
    tpu.vector_store %arg12[%c0_93, %c144_94], %67 {strides = array<i32>} : memref<14x432xf32, #tpu.memory_space<vmem>>, vector<7x144xf32>,
    %c10_95 = arith.constant 10 : index
    %c0_96 = arith.constant 0 : index
    %69 = vector.load %arg11[%c10_95, %c0_96] : memref<18x144xf32, #tpu.memory_space<vmem>>, vector<7x144xf32>
    %c7_97 = arith.constant 7 : index
    %c144_98 = arith.constant 144 : index
    %70 = vector.load %arg12[%c7_97, %c144_98] : memref<14x432xf32, #tpu.memory_space<vmem>>, vector<7x144xf32>
    tpu.vector_store %arg12[%c7_97, %c144_98], %69 {strides = array<i32>} : memref<14x432xf32, #tpu.memory_space<vmem>>, vector<7x144xf32>,
    %c2_99 = arith.constant 2 : index
    %c0_100 = arith.constant 0 : index
    %71 = vector.load %arg11[%c2_99, %c0_100] : memref<18x144xf32, #tpu.memory_space<vmem>>, vector<7x144xf32>
    %c0_101 = arith.constant 0 : index
    %c288_102 = arith.constant 288 : index
    %72 = vector.load %arg12[%c0_101, %c288_102] : memref<14x432xf32, #tpu.memory_space<vmem>>, vector<7x144xf32>
    tpu.vector_store %arg12[%c0_101, %c288_102], %71 {strides = array<i32>} : memref<14x432xf32, #tpu.memory_space<vmem>>, vector<7x144xf32>,
    %c11_103 = arith.constant 11 : index
    %c0_104 = arith.constant 0 : index
    %73 = vector.load %arg11[%c11_103, %c0_104] : memref<18x144xf32, #tpu.memory_space<vmem>>, vector<7x144xf32>
    %c7_105 = arith.constant 7 : index
    %c288_106 = arith.constant 288 : index
    %74 = vector.load %arg12[%c7_105, %c288_106] : memref<14x432xf32, #tpu.memory_space<vmem>>, vector<7x144xf32>
    tpu.vector_store %arg12[%c7_105, %c288_106], %73 {strides = array<i32>} : memref<14x432xf32, #tpu.memory_space<vmem>>, vector<7x144xf32>,
    %c0_107 = arith.constant 0 : index
    %c0_108 = arith.constant 0 : index
    %75 = vector.load %arg12[%c0_107, %c0_108] : memref<14x432xf32, #tpu.memory_space<vmem>>, vector<14x432xf32>
    %c0_109 = arith.constant 0 : index
    %c0_110 = arith.constant 0 : index
    %76 = vector.load %arg5[%c0_109, %c0_110] : memref<432x224xf32, #tpu.memory_space<vmem>>, vector<432x224xf32>
    %cst_111 = arith.constant dense<0.000000e+00> : vector<14x224xf32>
    %77 = tpu.matmul %75, %76, %cst_111 {dimension_numbers = #tpu.dot_dimension_numbers<[1], [0], [0], [1], [0, 0, 1, 1], [], []>} : vector<14x432xf32>, vector<432x224xf32>, vector<14x224xf32> -> vector<14x224xf32>
    %c0_112 = arith.constant 0 : index
    %c0_113 = arith.constant 0 : index
    %78 = vector.load %arg6[%c0_112, %c0_113] : memref<1x224xf32, #tpu.memory_space<vmem>>, vector<1x224xf32>
    %79 = vector.broadcast %78 : vector<1x224xf32> to vector<14x224xf32>
    %80 = arith.addf %77, %79 : vector<14x224xf32>
    %cst_114 = arith.constant 0.000000e+00 : f32
    %81 = vector.broadcast %cst_114 : f32 to vector<14x224xf32>
    %82 = arith.maximumf %80, %81 : vector<14x224xf32>
    %cst_115 = arith.constant 0.000000e+00 : f32
    %83 = vector.broadcast %cst_115 : f32 to vector<32x128xf32>
    %c0_116 = arith.constant 0 : index
    %c0_117 = arith.constant 0 : index
    %84 = vector.load %arg13[%c0_116, %c0_117] : memref<32x128xf32, #tpu.memory_space<vmem>>, vector<32x128xf32>
    tpu.vector_store %arg13[%c0_116, %c0_117], %83 {strides = array<i32>} : memref<32x128xf32, #tpu.memory_space<vmem>>, vector<32x128xf32>,
    %85 = vector.extract_strided_slice %82 {offsets = [0, 0], sizes = [1, 112], strides = [1, 1]} : vector<14x224xf32> to vector<1x112xf32>
    %c1_118 = arith.constant 1 : index
    %c8_119 = arith.constant 8 : index
    %86 = vector.load %arg13[%c1_118, %c8_119] : memref<32x128xf32, #tpu.memory_space<vmem>>, vector<1x112xf32>
    tpu.vector_store %arg13[%c1_118, %c8_119], %85 {strides = array<i32>} : memref<32x128xf32, #tpu.memory_space<vmem>>, vector<1x112xf32>,
    %87 = vector.extract_strided_slice %82 {offsets = [0, 112], sizes = [1, 112], strides = [1, 1]} : vector<14x224xf32> to vector<1x112xf32>
    %c2_120 = arith.constant 2 : index
    %c8_121 = arith.constant 8 : index
    %88 = vector.load %arg13[%c2_120, %c8_121] : memref<32x128xf32, #tpu.memory_space<vmem>>, vector<1x112xf32>
    tpu.vector_store %arg13[%c2_120, %c8_121], %87 {strides = array<i32>} : memref<32x128xf32, #tpu.memory_space<vmem>>, vector<1x112xf32>,
    %89 = vector.extract_strided_slice %82 {offsets = [1, 0], sizes = [1, 112], strides = [1, 1]} : vector<14x224xf32> to vector<1x112xf32>
    %c3_122 = arith.constant 3 : index
    %c8_123 = arith.constant 8 : index
    %90 = vector.load %arg13[%c3_122, %c8_123] : memref<32x128xf32, #tpu.memory_space<vmem>>, vector<1x112xf32>
    tpu.vector_store %arg13[%c3_122, %c8_123], %89 {strides = array<i32>} : memref<32x128xf32, #tpu.memory_space<vmem>>, vector<1x112xf32>,
    %91 = vector.extract_strided_slice %82 {offsets = [1, 112], sizes = [1, 112], strides = [1, 1]} : vector<14x224xf32> to vector<1x112xf32>
    %c4_124 = arith.constant 4 : index
    %c8_125 = arith.constant 8 : index
    %92 = vector.load %arg13[%c4_124, %c8_125] : memref<32x128xf32, #tpu.memory_space<vmem>>, vector<1x112xf32>
    tpu.vector_store %arg13[%c4_124, %c8_125], %91 {strides = array<i32>} : memref<32x128xf32, #tpu.memory_space<vmem>>, vector<1x112xf32>,
    %93 = vector.extract_strided_slice %82 {offsets = [2, 0], sizes = [1, 112], strides = [1, 1]} : vector<14x224xf32> to vector<1x112xf32>
    %c5_126 = arith.constant 5 : index
    %c8_127 = arith.constant 8 : index
    %94 = vector.load %arg13[%c5_126, %c8_127] : memref<32x128xf32, #tpu.memory_space<vmem>>, vector<1x112xf32>
    tpu.vector_store %arg13[%c5_126, %c8_127], %93 {strides = array<i32>} : memref<32x128xf32, #tpu.memory_space<vmem>>, vector<1x112xf32>,
    %95 = vector.extract_strided_slice %82 {offsets = [2, 112], sizes = [1, 112], strides = [1, 1]} : vector<14x224xf32> to vector<1x112xf32>
    %c6_128 = arith.constant 6 : index
    %c8_129 = arith.constant 8 : index
    %96 = vector.load %arg13[%c6_128, %c8_129] : memref<32x128xf32, #tpu.memory_space<vmem>>, vector<1x112xf32>
    tpu.vector_store %arg13[%c6_128, %c8_129], %95 {strides = array<i32>} : memref<32x128xf32, #tpu.memory_space<vmem>>, vector<1x112xf32>,
    %97 = vector.extract_strided_slice %82 {offsets = [3, 0], sizes = [1, 112], strides = [1, 1]} : vector<14x224xf32> to vector<1x112xf32>
    %c7_130 = arith.constant 7 : index
    %c8_131 = arith.constant 8 : index
    %98 = vector.load %arg13[%c7_130, %c8_131] : memref<32x128xf32, #tpu.memory_space<vmem>>, vector<1x112xf32>
    tpu.vector_store %arg13[%c7_130, %c8_131], %97 {strides = array<i32>} : memref<32x128xf32, #tpu.memory_space<vmem>>, vector<1x112xf32>,
    %99 = vector.extract_strided_slice %82 {offsets = [3, 112], sizes = [1, 112], strides = [1, 1]} : vector<14x224xf32> to vector<1x112xf32>
    %c8_132 = arith.constant 8 : index
    %c8_133 = arith.constant 8 : index
    %100 = vector.load %arg13[%c8_132, %c8_133] : memref<32x128xf32, #tpu.memory_space<vmem>>, vector<1x112xf32>
    tpu.vector_store %arg13[%c8_132, %c8_133], %99 {strides = array<i32>} : memref<32x128xf32, #tpu.memory_space<vmem>>, vector<1x112xf32>,
    %101 = vector.extract_strided_slice %82 {offsets = [4, 0], sizes = [1, 112], strides = [1, 1]} : vector<14x224xf32> to vector<1x112xf32>
    %c9_134 = arith.constant 9 : index
    %c8_135 = arith.constant 8 : index
    %102 = vector.load %arg13[%c9_134, %c8_135] : memref<32x128xf32, #tpu.memory_space<vmem>>, vector<1x112xf32>
    tpu.vector_store %arg13[%c9_134, %c8_135], %101 {strides = array<i32>} : memref<32x128xf32, #tpu.memory_space<vmem>>, vector<1x112xf32>,
    %103 = vector.extract_strided_slice %82 {offsets = [4, 112], sizes = [1, 112], strides = [1, 1]} : vector<14x224xf32> to vector<1x112xf32>
    %c10_136 = arith.constant 10 : index
    %c8_137 = arith.constant 8 : index
    %104 = vector.load %arg13[%c10_136, %c8_137] : memref<32x128xf32, #tpu.memory_space<vmem>>, vector<1x112xf32>
    tpu.vector_store %arg13[%c10_136, %c8_137], %103 {strides = array<i32>} : memref<32x128xf32, #tpu.memory_space<vmem>>, vector<1x112xf32>,
    %105 = vector.extract_strided_slice %82 {offsets = [5, 0], sizes = [1, 112], strides = [1, 1]} : vector<14x224xf32> to vector<1x112xf32>
    %c11_138 = arith.constant 11 : index
    %c8_139 = arith.constant 8 : index
    %106 = vector.load %arg13[%c11_138, %c8_139] : memref<32x128xf32, #tpu.memory_space<vmem>>, vector<1x112xf32>
    tpu.vector_store %arg13[%c11_138, %c8_139], %105 {strides = array<i32>} : memref<32x128xf32, #tpu.memory_space<vmem>>, vector<1x112xf32>,
    %107 = vector.extract_strided_slice %82 {offsets = [5, 112], sizes = [1, 112], strides = [1, 1]} : vector<14x224xf32> to vector<1x112xf32>
    %c12_140 = arith.constant 12 : index
    %c8_141 = arith.constant 8 : index
    %108 = vector.load %arg13[%c12_140, %c8_141] : memref<32x128xf32, #tpu.memory_space<vmem>>, vector<1x112xf32>
    tpu.vector_store %arg13[%c12_140, %c8_141], %107 {strides = array<i32>} : memref<32x128xf32, #tpu.memory_space<vmem>>, vector<1x112xf32>,
    %109 = vector.extract_strided_slice %82 {offsets = [6, 0], sizes = [1, 112], strides = [1, 1]} : vector<14x224xf32> to vector<1x112xf32>
    %c13_142 = arith.constant 13 : index
    %c8_143 = arith.constant 8 : index
    %110 = vector.load %arg13[%c13_142, %c8_143] : memref<32x128xf32, #tpu.memory_space<vmem>>, vector<1x112xf32>
    tpu.vector_store %arg13[%c13_142, %c8_143], %109 {strides = array<i32>} : memref<32x128xf32, #tpu.memory_space<vmem>>, vector<1x112xf32>,
    %111 = vector.extract_strided_slice %82 {offsets = [6, 112], sizes = [1, 112], strides = [1, 1]} : vector<14x224xf32> to vector<1x112xf32>
    %c14 = arith.constant 14 : index
    %c8_144 = arith.constant 8 : index
    %112 = vector.load %arg13[%c14, %c8_144] : memref<32x128xf32, #tpu.memory_space<vmem>>, vector<1x112xf32>
    tpu.vector_store %arg13[%c14, %c8_144], %111 {strides = array<i32>} : memref<32x128xf32, #tpu.memory_space<vmem>>, vector<1x112xf32>,
    %113 = vector.extract_strided_slice %82 {offsets = [7, 0], sizes = [1, 112], strides = [1, 1]} : vector<14x224xf32> to vector<1x112xf32>
    %c17_145 = arith.constant 17 : index
    %c8_146 = arith.constant 8 : index
    %114 = vector.load %arg13[%c17_145, %c8_146] : memref<32x128xf32, #tpu.memory_space<vmem>>, vector<1x112xf32>
    tpu.vector_store %arg13[%c17_145, %c8_146], %113 {strides = array<i32>} : memref<32x128xf32, #tpu.memory_space<vmem>>, vector<1x112xf32>,
    %115 = vector.extract_strided_slice %82 {offsets = [7, 112], sizes = [1, 112], strides = [1, 1]} : vector<14x224xf32> to vector<1x112xf32>
    %c18 = arith.constant 18 : index
    %c8_147 = arith.constant 8 : index
    %116 = vector.load %arg13[%c18, %c8_147] : memref<32x128xf32, #tpu.memory_space<vmem>>, vector<1x112xf32>
    tpu.vector_store %arg13[%c18, %c8_147], %115 {strides = array<i32>} : memref<32x128xf32, #tpu.memory_space<vmem>>, vector<1x112xf32>,
    %117 = vector.extract_strided_slice %82 {offsets = [8, 0], sizes = [1, 112], strides = [1, 1]} : vector<14x224xf32> to vector<1x112xf32>
    %c19 = arith.constant 19 : index
    %c8_148 = arith.constant 8 : index
    %118 = vector.load %arg13[%c19, %c8_148] : memref<32x128xf32, #tpu.memory_space<vmem>>, vector<1x112xf32>
    tpu.vector_store %arg13[%c19, %c8_148], %117 {strides = array<i32>} : memref<32x128xf32, #tpu.memory_space<vmem>>, vector<1x112xf32>,
    %119 = vector.extract_strided_slice %82 {offsets = [8, 112], sizes = [1, 112], strides = [1, 1]} : vector<14x224xf32> to vector<1x112xf32>
    %c20 = arith.constant 20 : index
    %c8_149 = arith.constant 8 : index
    %120 = vector.load %arg13[%c20, %c8_149] : memref<32x128xf32, #tpu.memory_space<vmem>>, vector<1x112xf32>
    tpu.vector_store %arg13[%c20, %c8_149], %119 {strides = array<i32>} : memref<32x128xf32, #tpu.memory_space<vmem>>, vector<1x112xf32>,
    %121 = vector.extract_strided_slice %82 {offsets = [9, 0], sizes = [1, 112], strides = [1, 1]} : vector<14x224xf32> to vector<1x112xf32>
    %c21 = arith.constant 21 : index
    %c8_150 = arith.constant 8 : index
    %122 = vector.load %arg13[%c21, %c8_150] : memref<32x128xf32, #tpu.memory_space<vmem>>, vector<1x112xf32>
    tpu.vector_store %arg13[%c21, %c8_150], %121 {strides = array<i32>} : memref<32x128xf32, #tpu.memory_space<vmem>>, vector<1x112xf32>,
    %123 = vector.extract_strided_slice %82 {offsets = [9, 112], sizes = [1, 112], strides = [1, 1]} : vector<14x224xf32> to vector<1x112xf32>
    %c22 = arith.constant 22 : index
    %c8_151 = arith.constant 8 : index
    %124 = vector.load %arg13[%c22, %c8_151] : memref<32x128xf32, #tpu.memory_space<vmem>>, vector<1x112xf32>
    tpu.vector_store %arg13[%c22, %c8_151], %123 {strides = array<i32>} : memref<32x128xf32, #tpu.memory_space<vmem>>, vector<1x112xf32>,
    %125 = vector.extract_strided_slice %82 {offsets = [10, 0], sizes = [1, 112], strides = [1, 1]} : vector<14x224xf32> to vector<1x112xf32>
    %c23 = arith.constant 23 : index
    %c8_152 = arith.constant 8 : index
    %126 = vector.load %arg13[%c23, %c8_152] : memref<32x128xf32, #tpu.memory_space<vmem>>, vector<1x112xf32>
    tpu.vector_store %arg13[%c23, %c8_152], %125 {strides = array<i32>} : memref<32x128xf32, #tpu.memory_space<vmem>>, vector<1x112xf32>,
    %127 = vector.extract_strided_slice %82 {offsets = [10, 112], sizes = [1, 112], strides = [1, 1]} : vector<14x224xf32> to vector<1x112xf32>
    %c24 = arith.constant 24 : index
    %c8_153 = arith.constant 8 : index
    %128 = vector.load %arg13[%c24, %c8_153] : memref<32x128xf32, #tpu.memory_space<vmem>>, vector<1x112xf32>
    tpu.vector_store %arg13[%c24, %c8_153], %127 {strides = array<i32>} : memref<32x128xf32, #tpu.memory_space<vmem>>, vector<1x112xf32>,
    %129 = vector.extract_strided_slice %82 {offsets = [11, 0], sizes = [1, 112], strides = [1, 1]} : vector<14x224xf32> to vector<1x112xf32>
    %c25 = arith.constant 25 : index
    %c8_154 = arith.constant 8 : index
    %130 = vector.load %arg13[%c25, %c8_154] : memref<32x128xf32, #tpu.memory_space<vmem>>, vector<1x112xf32>
    tpu.vector_store %arg13[%c25, %c8_154], %129 {strides = array<i32>} : memref<32x128xf32, #tpu.memory_space<vmem>>, vector<1x112xf32>,
    %131 = vector.extract_strided_slice %82 {offsets = [11, 112], sizes = [1, 112], strides = [1, 1]} : vector<14x224xf32> to vector<1x112xf32>
    %c26 = arith.constant 26 : index
    %c8_155 = arith.constant 8 : index
    %132 = vector.load %arg13[%c26, %c8_155] : memref<32x128xf32, #tpu.memory_space<vmem>>, vector<1x112xf32>
    tpu.vector_store %arg13[%c26, %c8_155], %131 {strides = array<i32>} : memref<32x128xf32, #tpu.memory_space<vmem>>, vector<1x112xf32>,
    %133 = vector.extract_strided_slice %82 {offsets = [12, 0], sizes = [1, 112], strides = [1, 1]} : vector<14x224xf32> to vector<1x112xf32>
    %c27 = arith.constant 27 : index
    %c8_156 = arith.constant 8 : index
    %134 = vector.load %arg13[%c27, %c8_156] : memref<32x128xf32, #tpu.memory_space<vmem>>, vector<1x112xf32>
    tpu.vector_store %arg13[%c27, %c8_156], %133 {strides = array<i32>} : memref<32x128xf32, #tpu.memory_space<vmem>>, vector<1x112xf32>,
    %135 = vector.extract_strided_slice %82 {offsets = [12, 112], sizes = [1, 112], strides = [1, 1]} : vector<14x224xf32> to vector<1x112xf32>
    %c28 = arith.constant 28 : index
    %c8_157 = arith.constant 8 : index
    %136 = vector.load %arg13[%c28, %c8_157] : memref<32x128xf32, #tpu.memory_space<vmem>>, vector<1x112xf32>
    tpu.vector_store %arg13[%c28, %c8_157], %135 {strides = array<i32>} : memref<32x128xf32, #tpu.memory_space<vmem>>, vector<1x112xf32>,
    %137 = vector.extract_strided_slice %82 {offsets = [13, 0], sizes = [1, 112], strides = [1, 1]} : vector<14x224xf32> to vector<1x112xf32>
    %c29 = arith.constant 29 : index
    %c8_158 = arith.constant 8 : index
    %138 = vector.load %arg13[%c29, %c8_158] : memref<32x128xf32, #tpu.memory_space<vmem>>, vector<1x112xf32>
    tpu.vector_store %arg13[%c29, %c8_158], %137 {strides = array<i32>} : memref<32x128xf32, #tpu.memory_space<vmem>>, vector<1x112xf32>,
    %139 = vector.extract_strided_slice %82 {offsets = [13, 112], sizes = [1, 112], strides = [1, 1]} : vector<14x224xf32> to vector<1x112xf32>
    %c30 = arith.constant 30 : index
    %c8_159 = arith.constant 8 : index
    %140 = vector.load %arg13[%c30, %c8_159] : memref<32x128xf32, #tpu.memory_space<vmem>>, vector<1x112xf32>
    tpu.vector_store %arg13[%c30, %c8_159], %139 {strides = array<i32>} : memref<32x128xf32, #tpu.memory_space<vmem>>, vector<1x112xf32>,
    %c0_160 = arith.constant 0 : index
    %c0_161 = arith.constant 0 : index
    %141 = vector.load %arg13[%c0_160, %c0_161] : memref<32x128xf32, #tpu.memory_space<vmem>>, vector<14x128xf32>
    %c0_162 = arith.constant 0 : index
    %c0_163 = arith.constant 0 : index
    %142 = vector.load %arg14[%c0_162, %c0_163] : memref<28x384xf32, #tpu.memory_space<vmem>>, vector<14x128xf32>
    tpu.vector_store %arg14[%c0_162, %c0_163], %141 {strides = array<i32>} : memref<28x384xf32, #tpu.memory_space<vmem>>, vector<14x128xf32>,
    %c16_164 = arith.constant 16 : index
    %c0_165 = arith.constant 0 : index
    %143 = vector.load %arg13[%c16_164, %c0_165] : memref<32x128xf32, #tpu.memory_space<vmem>>, vector<14x128xf32>
    %c14_166 = arith.constant 14 : index
    %c0_167 = arith.constant 0 : index
    %144 = vector.load %arg14[%c14_166, %c0_167] : memref<28x384xf32, #tpu.memory_space<vmem>>, vector<14x128xf32>
    tpu.vector_store %arg14[%c14_166, %c0_167], %143 {strides = array<i32>} : memref<28x384xf32, #tpu.memory_space<vmem>>, vector<14x128xf32>,
    %c1_168 = arith.constant 1 : index
    %c0_169 = arith.constant 0 : index
    %145 = vector.load %arg13[%c1_168, %c0_169] : memref<32x128xf32, #tpu.memory_space<vmem>>, vector<14x128xf32>
    %c0_170 = arith.constant 0 : index
    %c128 = arith.constant 128 : index
    %146 = vector.load %arg14[%c0_170, %c128] : memref<28x384xf32, #tpu.memory_space<vmem>>, vector<14x128xf32>
    tpu.vector_store %arg14[%c0_170, %c128], %145 {strides = array<i32>} : memref<28x384xf32, #tpu.memory_space<vmem>>, vector<14x128xf32>,
    %c17_171 = arith.constant 17 : index
    %c0_172 = arith.constant 0 : index
    %147 = vector.load %arg13[%c17_171, %c0_172] : memref<32x128xf32, #tpu.memory_space<vmem>>, vector<14x128xf32>
    %c14_173 = arith.constant 14 : index
    %c128_174 = arith.constant 128 : index
    %148 = vector.load %arg14[%c14_173, %c128_174] : memref<28x384xf32, #tpu.memory_space<vmem>>, vector<14x128xf32>
    tpu.vector_store %arg14[%c14_173, %c128_174], %147 {strides = array<i32>} : memref<28x384xf32, #tpu.memory_space<vmem>>, vector<14x128xf32>,
    %c2_175 = arith.constant 2 : index
    %c0_176 = arith.constant 0 : index
    %149 = vector.load %arg13[%c2_175, %c0_176] : memref<32x128xf32, #tpu.memory_space<vmem>>, vector<14x128xf32>
    %c0_177 = arith.constant 0 : index
    %c256 = arith.constant 256 : index
    %150 = vector.load %arg14[%c0_177, %c256] : memref<28x384xf32, #tpu.memory_space<vmem>>, vector<14x128xf32>
    tpu.vector_store %arg14[%c0_177, %c256], %149 {strides = array<i32>} : memref<28x384xf32, #tpu.memory_space<vmem>>, vector<14x128xf32>,
    %c18_178 = arith.constant 18 : index
    %c0_179 = arith.constant 0 : index
    %151 = vector.load %arg13[%c18_178, %c0_179] : memref<32x128xf32, #tpu.memory_space<vmem>>, vector<14x128xf32>
    %c14_180 = arith.constant 14 : index
    %c256_181 = arith.constant 256 : index
    %152 = vector.load %arg14[%c14_180, %c256_181] : memref<28x384xf32, #tpu.memory_space<vmem>>, vector<14x128xf32>
    tpu.vector_store %arg14[%c14_180, %c256_181], %151 {strides = array<i32>} : memref<28x384xf32, #tpu.memory_space<vmem>>, vector<14x128xf32>,
    %c0_182 = arith.constant 0 : index
    %c0_183 = arith.constant 0 : index
    %153 = vector.load %arg14[%c0_182, %c0_183] : memref<28x384xf32, #tpu.memory_space<vmem>>, vector<28x384xf32>
    %c0_184 = arith.constant 0 : index
    %c0_185 = arith.constant 0 : index
    %154 = vector.load %arg7[%c0_184, %c0_185] : memref<384x56xf32, #tpu.memory_space<vmem>>, vector<384x56xf32>
    %cst_186 = arith.constant dense<0.000000e+00> : vector<28x56xf32>
    %155 = tpu.matmul %153, %154, %cst_186 {dimension_numbers = #tpu.dot_dimension_numbers<[1], [0], [0], [1], [0, 0, 1, 1], [], []>} : vector<28x384xf32>, vector<384x56xf32>, vector<28x56xf32> -> vector<28x56xf32>
    %c0_187 = arith.constant 0 : index
    %c0_188 = arith.constant 0 : index
    %156 = vector.load %arg8[%c0_187, %c0_188] : memref<1x56xf32, #tpu.memory_space<vmem>>, vector<1x56xf32>
    %157 = vector.broadcast %156 : vector<1x56xf32> to vector<28x56xf32>
    %158 = arith.addf %155, %157 : vector<28x56xf32>
    %cst_189 = arith.constant 0.000000e+00 : f32
    %159 = vector.broadcast %cst_189 : f32 to vector<28x56xf32>
    %160 = arith.maximumf %158, %159 : vector<28x56xf32>
    %c0_190 = arith.constant 0 : index
    %c0_191 = arith.constant 0 : index
    %161 = vector.load %arg9[%c0_190, %c0_191] : memref<28x56xf32, #tpu.memory_space<vmem>>, vector<28x56xf32>
    tpu.vector_store %arg9[%c0_190, %c0_191], %160 {strides = array<i32>} : memref<28x56xf32, #tpu.memory_space<vmem>>, vector<28x56xf32>,
    return
  }
  func.func @transform_0(%arg0: i32) -> (i32, i32) {
    %c0_i32 = arith.constant 0 : i32
    %c0_i32_0 = arith.constant 0 : i32
    %c0_i32_1 = arith.constant 0 : i32
    return %c0_i32, %c0_i32_0 : i32, i32
  }
  func.func @transform_1(%arg0: i32) -> (i32, i32) {
    %c0_i32 = arith.constant 0 : i32
    %c0_i32_0 = arith.constant 0 : i32
    %c0_i32_1 = arith.constant 0 : i32
    return %c0_i32, %c0_i32_0 : i32, i32
  }
  func.func @transform_2(%arg0: i32) -> (i32, i32) {
    %c0_i32 = arith.constant 0 : i32
    %c0_i32_0 = arith.constant 0 : i32
    %c0_i32_1 = arith.constant 0 : i32
    return %c0_i32, %c0_i32_0 : i32, i32
  }
  func.func @transform_3(%arg0: i32) -> (i32, i32) {
    %c0_i32 = arith.constant 0 : i32
    %c0_i32_0 = arith.constant 0 : i32
    %c0_i32_1 = arith.constant 0 : i32
    return %c0_i32, %c0_i32_0 : i32, i32
  }
  func.func @transform_4(%arg0: i32) -> (i32, i32) {
    %c0_i32 = arith.constant 0 : i32
    %c0_i32_0 = arith.constant 0 : i32
    %c0_i32_1 = arith.constant 0 : i32
    return %c0_i32, %c0_i32_0 : i32, i32
  }
  func.func @transform_5(%arg0: i32) -> (i32, i32) {
    %c0_i32 = arith.constant 0 : i32
    %c0_i32_0 = arith.constant 0 : i32
    %c0_i32_1 = arith.constant 0 : i32
    return %c0_i32, %c0_i32_0 : i32, i32
  }
  func.func @transform_6(%arg0: i32) -> (i32, i32) {
    %c0_i32 = arith.constant 0 : i32
    %c0_i32_0 = arith.constant 0 : i32
    %c0_i32_1 = arith.constant 0 : i32
    return %c0_i32, %c0_i32_0 : i32, i32
  }
  func.func @transform_7(%arg0: i32) -> (i32, i32) {
    %c0_i32 = arith.constant 0 : i32
    %c0_i32_0 = arith.constant 0 : i32
    %c0_i32_1 = arith.constant 0 : i32
    return %c0_i32, %c0_i32_0 : i32, i32
  }
  func.func @transform_8(%arg0: i32) -> (i32, i32) {
    %c0_i32 = arith.constant 0 : i32
    %c0_i32_0 = arith.constant 0 : i32
    %c0_i32_1 = arith.constant 0 : i32
    return %c0_i32, %c0_i32_0 : i32, i32
  }
}

</mosaic_0001>

<llo_original>
// kernel: decoder_forward.1
$region0: #{decoder_forward.1}
  #allocation0 [shape = 'u32[]', space=smem, size = 0x4, offset = 0x4, fixed_abs, tag = 'smem constant byte address 0x4 - core index']
  #allocation1 [shape = 'u32[144,128]{1,0:T(1,128)}', space=vmem, size = 0x12000, scoped, tag = 'internal scratch']
  #allocation2 [shape = 'f32[14,119]{1,0:T(8,128)}', space=vmem, size = 0x2000, scoped, tag = 'scratch operand']
  #allocation3 [shape = 'f32[18,144]{1,0:T(8,128)}', space=vmem, size = 0x6000, scoped, tag = 'scratch operand']
  #allocation4 [shape = 'f32[14,432]{1,0:T(8,128)}', space=vmem, size = 0x8000, scoped, tag = 'scratch operand']
  #allocation5 [shape = 'f32[32,128]{1,0:T(8,128)}', space=vmem, size = 0x4000, scoped, tag = 'scratch operand']
  #allocation6 [shape = 'f32[28,384]{1,0:T(8,128)}', space=vmem, size = 0xc000, scoped, tag = 'scratch operand']
  %s0 = inlined_call_operand.vmem [shape: f32[2,17], index: 0, kind: input, shape index: {}]
  %s1 = inlined_call_operand.vmem [shape: f32[119,112], index: 1, kind: input, shape index: {}]
  %s2 = inlined_call_operand.vmem [shape: f32[432,112], index: 2, kind: input, shape index: {}]
  %s3 = inlined_call_operand.vmem [shape: f32[1,112], index: 3, kind: input, shape index: {}]
  %s4 = inlined_call_operand.hbm [shape: f32[432,224], index: 4, kind: input, shape index: {}]
  %s5 = inlined_call_operand.vmem [shape: f32[1,224], index: 5, kind: input, shape index: {}]
  %s6 = inlined_call_operand.vmem [shape: f32[384,56], index: 6, kind: input, shape index: {}]
  %s7 = inlined_call_operand.vmem [shape: f32[1,56], index: 7, kind: input, shape index: {}]
  %s8 = inlined_call_operand.vmem [shape: f32[28,56], index: 8, kind: output, shape index: {}]
  %s9 = sld [smem:[#allocation0]]
  $region46: #{decoder_forward.1} parent=0
    _
  %s11 = ssub.s32 1, %s9
  %s12 = scalar_select 0, %s11, %s9
  $region1: #{decoder_forward.1} parent=0
    #allocation7 [shape = 'u8[442368]{0}', space=vmem, size = 0x6c000, scoped, tag = 'input window, operand 4, single buffered']
    #allocation8 [shape = 's32[1]{0}', space=sflag, size = 0x4, scoped, tag = 'scoped memory for decoder_forward.1']
    %13 = vsyncpa [#allocation8], 0
    // Predicated region
    $region2: #{decoder_forward.1} parent=1 // pred_check
      _
    $region3: #{decoder_forward.1} parent=1 // pred_check_branch
      %15 = sbr.rel (0) target = $region5
    $region4: #{decoder_forward.1} parent=1 // pred_region
      _
    $region5: #{decoder_forward.1} parent=1 // pred_fallthru
      _
    // Predicated region
    $region6: #{decoder_forward.1} parent=1 // pred_check
      _
    $region7: #{decoder_forward.1} parent=1 // pred_check_branch
      %17 = sbr.rel (0) target = $region9
    $region8: #{decoder_forward.1} parent=1 // pred_region
      _
    $region9: #{decoder_forward.1} parent=1 // pred_fallthru
      _
    // Predicated region
    $region10: #{decoder_forward.1} parent=1 // pred_check
      _
    $region11: #{decoder_forward.1} parent=1 // pred_check_branch
      %19 = sbr.rel (0) target = $region13
    $region12: #{decoder_forward.1} parent=1 // pred_region
      _
    $region13: #{decoder_forward.1} parent=1 // pred_fallthru
      _
    // Predicated region
    $region14: #{decoder_forward.1} parent=1 // pred_check
      _
    $region15: #{decoder_forward.1} parent=1 // pred_check_branch
      %21 = sbr.rel (0) target = $region17
    $region16: #{decoder_forward.1} parent=1 // pred_region
      _
    $region17: #{decoder_forward.1} parent=1 // pred_fallthru
      _
    // Predicated region
    $region18: #{decoder_forward.1} parent=1 // pred_check
      _
    $region19: #{decoder_forward.1} parent=1 // pred_check_branch
      %23 = sbr.rel (0) target = $region21
    $region20: #{decoder_forward.1} parent=1 // pred_region
      %s25 = ssub.s32 13824, 13824
      %26 = vsyncadd [#allocation8], %s25
      %s27 = sshll.u32 [#allocation7], 4
      %s28 = int_to_ptr.vmem [resolvable:$true] %s27
      %33 = dma.hbm_to_vmem [thread:$0]  %s4, 13824, %s28, [#allocation8], 256, 256, 16
    $region21: #{decoder_forward.1} parent=1 // pred_fallthru
      _
    // Predicated region
    $region22: #{decoder_forward.1} parent=1 // pred_check
      _
    $region23: #{decoder_forward.1} parent=1 // pred_check_branch
      %35 = sbr.rel (0) target = $region25
    $region24: #{decoder_forward.1} parent=1 // pred_region
      _
    $region25: #{decoder_forward.1} parent=1 // pred_fallthru
      _
    // Predicated region
    $region26: #{decoder_forward.1} parent=1 // pred_check
      _
    $region27: #{decoder_forward.1} parent=1 // pred_check_branch
      %37 = sbr.rel (0) target = $region29
    $region28: #{decoder_forward.1} parent=1 // pred_region
      _
    $region29: #{decoder_forward.1} parent=1 // pred_fallthru
      _
    // Predicated region
    $region30: #{decoder_forward.1} parent=1 // pred_check
      _
    $region31: #{decoder_forward.1} parent=1 // pred_check_branch
      %39 = sbr.rel (0) target = $region33
    $region32: #{decoder_forward.1} parent=1 // pred_region
      _
    $region33: #{decoder_forward.1} parent=1 // pred_fallthru
      _
    // Predicated region
    $region34: #{decoder_forward.1} parent=1 // pred_check
      _
    $region35: #{decoder_forward.1} parent=1 // pred_check_branch
      %41 = sbr.rel (0) target = $region37
    $region36: #{decoder_forward.1} parent=1 // pred_region
      %42 = dma.done [#allocation8], 13824
    $region37: #{decoder_forward.1} parent=1 // pred_fallthru
      _
    %vm43 = vcmask 973824
    %44 = vst.msk [vmem:[#allocation2] sm:$0xff] %vm43, 0.0
    %vm45 = vcmask 971776
    %46 = vst.msk [vmem:[#allocation2 + $0x8] sm:$0x3f] %vm45, 0.0
    %v47 = vld [vmem:[%s0] sm:$0x1]
    %vm48 = vcmask 131072
    %49 = vst.msk [vmem:[#allocation2] sm:$0x1] %vm48, %v47
    %v50 = vld [vmem:[%s0] sm:$0x1]
    %52 = vrot.lane.b32.xlu0 %v50, 17
    %v53 = vpop.permute.xlu0 %52
    %vm55 = vcmask 270472
    %56 = vst.msk [vmem:[#allocation2 + $0x1] sm:$0x1] %vm55, %v53
    %v57 = vld [vmem:[%s0] sm:$0x1]
    %59 = vrot.lane.b32.xlu0 %v57, 34
    %v60 = vpop.permute.xlu0 %59
    %vm62 = vcmask 409872
    %63 = vst.msk [vmem:[#allocation2 + $0x2] sm:$0x1] %vm62, %v60
    %v64 = vld [vmem:[%s0] sm:$0x1]
    %66 = vrot.lane.b32.xlu0 %v64, 51
    %v67 = vpop.permute.xlu0 %66
    %vm69 = vcmask 549272
    %70 = vst.msk [vmem:[#allocation2 + $0x3] sm:$0x1] %vm69, %v67
    %v71 = vld [vmem:[%s0] sm:$0x1]
    %73 = vrot.lane.b32.xlu0 %v71, 68
    %v74 = vpop.permute.xlu0 %73
    %vm76 = vcmask 688672
    %77 = vst.msk [vmem:[#allocation2 + $0x4] sm:$0x1] %vm76, %v74
    %v78 = vld [vmem:[%s0] sm:$0x1]
    %80 = vrot.lane.b32.xlu0 %v78, 85
    %v81 = vpop.permute.xlu0 %80
    %vm83 = vcmask 828072
    %84 = vst.msk [vmem:[#allocation2 + $0x5] sm:$0x1] %vm83, %v81
    %v85 = vld [vmem:[%s0] sm:$0x1]
    %87 = vrot.lane.b32.xlu0 %v85, 102
    %v88 = vpop.permute.xlu0 %87
    %vm90 = vcmask 967472
    %91 = vst.msk [vmem:[#allocation2 + $0x6] sm:$0x1] %vm90, %v88
    %v92 = vld [vmem:[%s0 + $0x1] sm:$0x1]
    %93 = vst.msk [vmem:[#allocation2 + $0x7] sm:$0x1] %vm48, %v92
    %v94 = vld [vmem:[%s0 + $0x1] sm:$0x1]
    %96 = vrot.lane.b32.xlu0 %v94, 17
    %v97 = vpop.permute.xlu0 %96
    %99 = vst.msk [vmem:[#allocation2 + $0x8] sm:$0x1] %vm55, %v97
    %v100 = vld [vmem:[%s0 + $0x1] sm:$0x1]
    %102 = vrot.lane.b32.xlu0 %v100, 34
    %v103 = vpop.permute.xlu0 %102
    %105 = vst.msk [vmem:[#allocation2 + $0x9] sm:$0x1] %vm62, %v103
    %v106 = vld [vmem:[%s0 + $0x1] sm:$0x1]
    %108 = vrot.lane.b32.xlu0 %v106, 51
    %v109 = vpop.permute.xlu0 %108
    %111 = vst.msk [vmem:[#allocation2 + $0xa] sm:$0x1] %vm69, %v109
    %v112 = vld [vmem:[%s0 + $0x1] sm:$0x1]
    %114 = vrot.lane.b32.xlu0 %v112, 68
    %v115 = vpop.permute.xlu0 %114
    %117 = vst.msk [vmem:[#allocation2 + $0xb] sm:$0x1] %vm76, %v115
    %v118 = vld [vmem:[%s0 + $0x1] sm:$0x1]
    %120 = vrot.lane.b32.xlu0 %v118, 85
    %v121 = vpop.permute.xlu0 %120
    %123 = vst.msk [vmem:[#allocation2 + $0xc] sm:$0x1] %vm83, %v121
    %v124 = vld [vmem:[%s0 + $0x1] sm:$0x1]
    %126 = vrot.lane.b32.xlu0 %v124, 102
    %v127 = vpop.permute.xlu0 %126
    %129 = vst.msk [vmem:[#allocation2 + $0xd] sm:$0x1] %vm90, %v127
    %v130 = vld [vmem:[#allocation2] sm:$0xff]
    %v131 = vld [vmem:[#allocation2 + $0x8] sm:$0x3f]
    %v132 = vld [vmem:[%s1] sm:$0xff]
    %v133 = vld [vmem:[%s1 + $0x8] sm:$0xff]
    %v134 = vld [vmem:[%s1 + $0x10] sm:$0xff]
    %v135 = vld [vmem:[%s1 + $0x18] sm:$0xff]
    %v136 = vld [vmem:[%s1 + $0x20] sm:$0xff]
    %v137 = vld [vmem:[%s1 + $0x28] sm:$0xff]
    %v138 = vld [vmem:[%s1 + $0x30] sm:$0xff]
    %v139 = vld [vmem:[%s1 + $0x38] sm:$0xff]
    %v140 = vld [vmem:[%s1 + $0x40] sm:$0xff]
    %v141 = vld [vmem:[%s1 + $0x48] sm:$0xff]
    %v142 = vld [vmem:[%s1 + $0x50] sm:$0xff]
    %v143 = vld [vmem:[%s1 + $0x58] sm:$0xff]
    %v144 = vld [vmem:[%s1 + $0x60] sm:$0xff]
    %v145 = vld [vmem:[%s1 + $0x68] sm:$0xff]
    %v146 = vld [vmem:[%s1 + $0x70] sm:$0x7f]
    %v148 = vsel %vm43, %v130, 0
    %v151 = vsel %vm43, %v131, 0
    %vm153 = vcmask 1046528
    %v155 = vsel %vm153, %v146, 0
    %157 = vmatprep.subr.mxu0 0.0
    %158 = vmatpush1.msra.mxu0 0.0
    %159 = vmatprep.subr.mxu0 0.0
    %160 = vmatpush1.msra.mxu0 %v155
    %161 = vmatprep.subr.mxu0 0.0
    %162 = vmatpush1.msra.mxu0 %v145
    %163 = vmatprep.subr.mxu0 0.0
    %164 = vmatpush1.msra.mxu0 %v144
    %165 = vmatprep.subr.mxu0 0.0
    %166 = vmatpush1.msra.mxu0 %v143
    %167 = vmatprep.subr.mxu0 0.0
    %168 = vmatpush1.msra.mxu0 %v142
    %169 = vmatprep.subr.mxu0 0.0
    %170 = vmatpush1.msra.mxu0 %v141
    %171 = vmatprep.subr.mxu0 0.0
    %172 = vmatpush1.msra.mxu0 %v140
    %173 = vmatprep.subr.mxu0 0.0
    %174 = vmatpush1.msra.mxu0 %v139
    %175 = vmatprep.subr.mxu0 0.0
    %176 = vmatpush1.msra.mxu0 %v138
    %177 = vmatprep.subr.mxu0 0.0
    %178 = vmatpush1.msra.mxu0 %v137
    %179 = vmatprep.subr.mxu0 0.0
    %180 = vmatpush1.msra.mxu0 %v136
    %181 = vmatprep.subr.mxu0 0.0
    %182 = vmatpush1.msra.mxu0 %v135
    %183 = vmatprep.subr.mxu0 0.0
    %184 = vmatpush1.msra.mxu0 %v134
    %185 = vmatprep.subr.mxu0 0.0
    %186 = vmatpush1.msra.mxu0 %v133
    %187 = vmatprep.subr.mxu0 0.0
    %188 = vmatpush1.msra.mxu0 %v132
    %189 = vmatprep.subr.mxu0 0.0
    %190 = vmatpush2.msra.mxu0 0.0
    %191 = vmatprep.subr.mxu0 0.0
    %192 = vmatpush2.msra.mxu0 0.0
    %193 = vmatprep.subr.mxu0 0.0
    %194 = vmatpush2.msra.mxu0 0.0
    %195 = vmatprep.subr.mxu0 0.0
    %196 = vmatpush2.msra.mxu0 0.0
    %197 = vmatprep.subr.mxu0 0.0
    %198 = vmatpush2.msra.mxu0 0.0
    %199 = vmatprep.subr.mxu0 0.0
    %200 = vmatpush2.msra.mxu0 0.0
    %201 = vmatprep.subr.mxu0 0.0
    %202 = vmatpush2.msra.mxu0 0.0
    %203 = vmatprep.subr.mxu0 0.0
    %204 = vmatpush2.msra.mxu0 0.0
    %205 = vmatprep.subr.mxu0 0.0
    %206 = vmatpush2.msra.mxu0 0.0
    %207 = vmatprep.subr.mxu0 0.0
    %208 = vmatpush2.msra.mxu0 0.0
    %209 = vmatprep.subr.mxu0 0.0
    %210 = vmatpush2.msra.mxu0 0.0
    %211 = vmatprep.subr.mxu0 0.0
    %212 = vmatpush2.msra.mxu0 0.0
    %213 = vmatprep.subr.mxu0 0.0
    %214 = vmatpush2.msra.mxu0 0.0
    %215 = vmatprep.subr.mxu0 0.0
    %216 = vmatpush2.msra.mxu0 0.0
    %217 = vmatprep.subr.mxu0 0.0
    %218 = vmatpush2.msra.mxu0 0.0
    %219 = vmatprep.subr.mxu0 0.0
    %220 = vmatpush2.msra.mxu0 0.0
    %221 = vmatprep.mubr.f32.mxu0 0.0
    %222 = vmatmul.mubr.f32.gmra.mxu0 %v148
    %v223 = vpop.f32.mrf.mxu0
    %v224 = vadd.f32 0.0, %v223
    %v225 = vpop.f32.mrf.mxu0
    %226 = vmatprep.mubr.f32.mxu0 0.0
    %227 = vmatmul.mubr.f32.gmra.mxu0 %v151
    %v228 = vpop.f32.mrf.mxu0
    %v229 = vadd.f32 0.0, %v228
    %v230 = vpop.f32.mrf.mxu0
    %231 = vdwg.mxu0
    %232 = vst [vmem:[#allocation3] sm:$0xff] 0.0
    %vm233 = vcmask 130048
    %234 = vst.msk [vmem:[#allocation3 + $0x8] sm:$0xff] %vm233, 0.0
    %235 = vst [vmem:[#allocation3 + $0x10] sm:$0xff] 0.0
    %236 = vst.msk [vmem:[#allocation3 + $0x18] sm:$0xff] %vm233, 0.0
    %237 = vst [vmem:[#allocation3 + $0x20] sm:$0x3] 0.0
    %vm238 = vcmask 123904
    %239 = vst.msk [vmem:[#allocation3 + $0x28] sm:$0x3] %vm238, 0.0
    %v241 = vrot.slane %v224, 7
    %242 = vrot.lane.b32.xlu0 %v241, 16
    %v243 = vpop.permute.xlu0 %242
    %vm245 = vcmask 1047681
    %246 = vst.msk [vmem:[#allocation3] sm:$0xfe] %vm245, %v243
    %vm248 = vcmask 1042432
    %v249 = vrot.slane %v224, 5
    %v250 = vrot.slane %v229, 5
    %v251 = vsel %vm248, %v249, %v250
    %252 = vrot.lane.b32.xlu0 %v251, 16
    %v253 = vpop.permute.xlu0 %252
    %254 = vrot.lane.b32.xlu0 %v250, 16
    %v255 = vpop.permute.xlu0 %254
    %vm258 = vcmask 1047682
    %259 = vst.msk [vmem:[#allocation3 + $0x10] sm:$0xfc] %vm258, %v253
    %vm260 = vcmask 1040512
    %261 = vst.msk [vmem:[#allocation3 + $0x20] sm:$0x1] %vm260, %v255
    %v262 = vld [vmem:[#allocation3] sm:$0x7f]
    %v263 = vld [vmem:[#allocation3 + $0x8] sm:$0x7f]
    %264 = vst [vmem:[#allocation4] sm:$0x7f] %v262
    %vm265 = vcmask 129024
    %266 = vst.msk [vmem:[#allocation4 + $0x8] sm:$0x7f] %vm265, %v263
    %v267 = vld [vmem:[#allocation3 + $0x10] sm:$0xfe]
    %v268 = vld [vmem:[#allocation3 + $0x18] sm:$0xfe]
    %v271 = vrot.slane %v267, 2
    %v272 = vrot.slane %v268, 2
    %275 = vst [vmem:[#allocation4] sm:$0x80] %v271
    %vm276 = vcmask 130055
    %277 = vst.msk [vmem:[#allocation4 + $0x8] sm:$0x80] %vm276, %v272
    %278 = vst [vmem:[#allocation4 + $0x20] sm:$0x3f] %v271
    %vm279 = vcmask 128000
    %280 = vst.msk [vmem:[#allocation4 + $0x28] sm:$0x3f] %vm279, %v272
    %v281 = vld [vmem:[#allocation3] sm:$0xfe]
    %v282 = vld [vmem:[#allocation3 + $0x8] sm:$0xfe]
    %v285 = vrot.slane %v281, 1
    %v286 = vrot.slane %v282, 1
    %287 = vrot.lane.b32.xlu0 %v285, 16
    %v288 = vpop.permute.xlu0 %287
    %289 = vrot.lane.b32.xlu0 %v286, 16
    %v290 = vpop.permute.xlu0 %289
    %v291 = vsel %vm233, %v288, %v290
    %vm294 = vcmask 1046656
    %295 = vst.msk [vmem:[#allocation4 + $0x8] sm:$0x7f] %vm294, %v288
    %vm296 = vcmask 260096
    %297 = vst.msk [vmem:[#allocation4 + $0x10] sm:$0x7f] %vm296, %v291
    %v298 = vld [vmem:[#allocation3 + $0x10] sm:$0xfc]
    %v299 = vld [vmem:[#allocation3 + $0x18] sm:$0xfc]
    %v300 = vld [vmem:[#allocation3 + $0x20] sm:$0x1]
    %v301 = vld [vmem:[#allocation3 + $0x28] sm:$0x1]
    %vm306 = vcmask 1044480
    %v307 = vrot.slane %v298, 3
    %v308 = vrot.slane %v299, 3
    %v309 = vrot.slane %v300, 3
    %v310 = vsel %vm306, %v307, %v309
    %v311 = vrot.slane %v301, 3
    %v312 = vsel %vm306, %v308, %v311
    %313 = vrot.lane.b32.xlu0 %v307, 16
    %v314 = vpop.permute.xlu0 %313
    %315 = vrot.lane.b32.xlu0 %v308, 16
    %v316 = vpop.permute.xlu0 %315
    %317 = vrot.lane.b32.xlu0 %v310, 16
    %v318 = vpop.permute.xlu0 %317
    %319 = vrot.lane.b32.xlu0 %v312, 16
    %v320 = vpop.permute.xlu0 %319
    %v321 = vsel %vm233, %v314, %v316
    %v322 = vsel %vm233, %v318, %v320
    %vm327 = vcmask 1047687
    %328 = vst.msk [vmem:[#allocation4 + $0x8] sm:$0x80] %vm327, %v314
    %vm329 = vcmask 261127
    %330 = vst.msk [vmem:[#allocation4 + $0x10] sm:$0x80] %vm329, %v321
    %vm331 = vcmask 1045632
    %332 = vst.msk [vmem:[#allocation4 + $0x28] sm:$0x3f] %vm331, %v318
    %vm333 = vcmask 259072
    %334 = vst.msk [vmem:[#allocation4 + $0x30] sm:$0x3f] %vm333, %v322
    %v335 = vld [vmem:[#allocation3] sm:$0xfc]
    %v336 = vld [vmem:[#allocation3 + $0x8] sm:$0xfc]
    %v337 = vld [vmem:[#allocation3 + $0x10] sm:$0x1]
    %v338 = vld [vmem:[#allocation3 + $0x18] sm:$0x1]
    %vm343 = vcmask 1045504
    %v344 = vrot.slane %v335, 2
    %v345 = vrot.slane %v337, 2
    %v346 = vsel %vm343, %v344, %v345
    %v347 = vrot.slane %v336, 2
    %v348 = vrot.slane %v338, 2
    %v349 = vsel %vm343, %v347, %v348
    %350 = vrot.lane.b32.xlu0 %v346, 32
    %v351 = vpop.permute.xlu0 %350
    %352 = vrot.lane.b32.xlu0 %v349, 32
    %v353 = vpop.permute.xlu0 %352
    %vm354 = vcmask 261120
    %v355 = vsel %vm354, %v351, %v353
    %vm358 = vcmask 1046784
    %359 = vst.msk [vmem:[#allocation4 + $0x10] sm:$0x7f] %vm358, %v351
    %vm360 = vcmask 391168
    %361 = vst.msk [vmem:[#allocation4 + $0x18] sm:$0x7f] %vm360, %v355
    %v362 = vld [vmem:[#allocation3 + $0x10] sm:$0xf8]
    %v363 = vld [vmem:[#allocation3 + $0x18] sm:$0xf8]
    %v364 = vld [vmem:[#allocation3 + $0x20] sm:$0x3]
    %v365 = vld [vmem:[#allocation3 + $0x28] sm:$0x3]
    %vm370 = vcmask 1043456
    %v371 = vrot.slane %v362, 4
    %v372 = vrot.slane %v363, 4
    %v373 = vrot.slane %v364, 4
    %v374 = vsel %vm370, %v371, %v373
    %v375 = vrot.slane %v365, 4
    %v376 = vsel %vm370, %v372, %v375
    %377 = vrot.lane.b32.xlu0 %v371, 32
    %v378 = vpop.permute.xlu0 %377
    %379 = vrot.lane.b32.xlu0 %v372, 32
    %v380 = vpop.permute.xlu0 %379
    %381 = vrot.lane.b32.xlu0 %v374, 32
    %v382 = vpop.permute.xlu0 %381
    %383 = vrot.lane.b32.xlu0 %v376, 32
    %v384 = vpop.permute.xlu0 %383
    %v385 = vsel %vm354, %v378, %v380
    %v386 = vsel %vm354, %v382, %v384
    %vm391 = vcmask 1047815
    %392 = vst.msk [vmem:[#allocation4 + $0x10] sm:$0x80] %vm391, %v378
    %vm393 = vcmask 392199
    %394 = vst.msk [vmem:[#allocation4 + $0x18] sm:$0x80] %vm393, %v385
    %vm395 = vcmask 1045760
    %396 = vst.msk [vmem:[#allocation4 + $0x30] sm:$0x3f] %vm395, %v382
    %vm397 = vcmask 390144
    %398 = vst.msk [vmem:[#allocation4 + $0x38] sm:$0x3f] %vm397, %v386
    %v399 = vld [vmem:[#allocation4] sm:$0xff]
    %v400 = vld [vmem:[#allocation4 + $0x8] sm:$0xff]
    %v401 = vld [vmem:[#allocation4 + $0x10] sm:$0xff]
    %v402 = vld [vmem:[#allocation4 + $0x18] sm:$0xff]
    %v403 = vld [vmem:[#allocation4 + $0x20] sm:$0x3f]
    %v404 = vld [vmem:[#allocation4 + $0x28] sm:$0x3f]
    %v405 = vld [vmem:[#allocation4 + $0x30] sm:$0x3f]
    %v406 = vld [vmem:[#allocation4 + $0x38] sm:$0x3f]
    %v407 = vld [vmem:[%s2] sm:$0xff]
    %v408 = vld [vmem:[%s2 + $0x8] sm:$0xff]
    %v409 = vld [vmem:[%s2 + $0x10] sm:$0xff]
    %v410 = vld [vmem:[%s2 + $0x18] sm:$0xff]
    %v411 = vld [vmem:[%s2 + $0x20] sm:$0xff]
    %v412 = vld [vmem:[%s2 + $0x28] sm:$0xff]
    %v413 = vld [vmem:[%s2 + $0x30] sm:$0xff]
    %v414 = vld [vmem:[%s2 + $0x38] sm:$0xff]
    %v415 = vld [vmem:[%s2 + $0x40] sm:$0xff]
    %v416 = vld [vmem:[%s2 + $0x48] sm:$0xff]
    %v417 = vld [vmem:[%s2 + $0x50] sm:$0xff]
    %v418 = vld [vmem:[%s2 + $0x58] sm:$0xff]
    %v419 = vld [vmem:[%s2 + $0x60] sm:$0xff]
    %v420 = vld [vmem:[%s2 + $0x68] sm:$0xff]
    %v421 = vld [vmem:[%s2 + $0x70] sm:$0xff]
    %v422 = vld [vmem:[%s2 + $0x78] sm:$0xff]
    %v423 = vld [vmem:[%s2 + $0x80] sm:$0xff]
    %v424 = vld [vmem:[%s2 + $0x88] sm:$0xff]
    %v425 = vld [vmem:[%s2 + $0x90] sm:$0xff]
    %v426 = vld [vmem:[%s2 + $0x98] sm:$0xff]
    %v427 = vld [vmem:[%s2 + $0xa0] sm:$0xff]
    %v428 = vld [vmem:[%s2 + $0xa8] sm:$0xff]
    %v429 = vld [vmem:[%s2 + $0xb0] sm:$0xff]
    %v430 = vld [vmem:[%s2 + $0xb8] sm:$0xff]
    %v431 = vld [vmem:[%s2 + $0xc0] sm:$0xff]
    %v432 = vld [vmem:[%s2 + $0xc8] sm:$0xff]
    %v433 = vld [vmem:[%s2 + $0xd0] sm:$0xff]
    %v434 = vld [vmem:[%s2 + $0xd8] sm:$0xff]
    %v435 = vld [vmem:[%s2 + $0xe0] sm:$0xff]
    %v436 = vld [vmem:[%s2 + $0xe8] sm:$0xff]
    %v437 = vld [vmem:[%s2 + $0xf0] sm:$0xff]
    %v438 = vld [vmem:[%s2 + $0xf8] sm:$0xff]
    %v439 = vld [vmem:[%s2 + $0x100] sm:$0xff]
    %v440 = vld [vmem:[%s2 + $0x108] sm:$0xff]
    %v441 = vld [vmem:[%s2 + $0x110] sm:$0xff]
    %v442 = vld [vmem:[%s2 + $0x118] sm:$0xff]
    %v443 = vld [vmem:[%s2 + $0x120] sm:$0xff]
    %v444 = vld [vmem:[%s2 + $0x128] sm:$0xff]
    %v445 = vld [vmem:[%s2 + $0x130] sm:$0xff]
    %v446 = vld [vmem:[%s2 + $0x138] sm:$0xff]
    %v447 = vld [vmem:[%s2 + $0x140] sm:$0xff]
    %v448 = vld [vmem:[%s2 + $0x148] sm:$0xff]
    %v449 = vld [vmem:[%s2 + $0x150] sm:$0xff]
    %v450 = vld [vmem:[%s2 + $0x158] sm:$0xff]
    %v451 = vld [vmem:[%s2 + $0x160] sm:$0xff]
    %v452 = vld [vmem:[%s2 + $0x168] sm:$0xff]
    %v453 = vld [vmem:[%s2 + $0x170] sm:$0xff]
    %v454 = vld [vmem:[%s2 + $0x178] sm:$0xff]
    %v455 = vld [vmem:[%s2 + $0x180] sm:$0xff]
    %v456 = vld [vmem:[%s2 + $0x188] sm:$0xff]
    %v457 = vld [vmem:[%s2 + $0x190] sm:$0xff]
    %v458 = vld [vmem:[%s2 + $0x198] sm:$0xff]
    %v459 = vld [vmem:[%s2 + $0x1a0] sm:$0xff]
    %v460 = vld [vmem:[%s2 + $0x1a8] sm:$0xff]
    %v461 = vld [vmem:[%s3] sm:$0x1]
    %v463 = vlaneseq
    %v464 = vshrl.u32 %v463, 7
    %v465 = vsub.s32 0, %v464
    %v466 = vrot.slane %v461, %v465
    %vm468 = vcmask 392192
    %v470 = vsel %vm468, %v402, 0
    %v473 = vsel %vm468, %v406, 0
    %475 = vmatprep.subr.mxu0 0.0
    %476 = vmatpush1.msra.mxu0 %v422
    %477 = vmatprep.subr.mxu0 0.0
    %478 = vmatpush1.msra.mxu0 %v421
    %479 = vmatprep.subr.mxu0 0.0
    %480 = vmatpush1.msra.mxu0 %v420
    %481 = vmatprep.subr.mxu0 0.0
    %482 = vmatpush1.msra.mxu0 %v419
    %483 = vmatprep.subr.mxu0 0.0
    %484 = vmatpush1.msra.mxu0 %v418
    %485 = vmatprep.subr.mxu0 0.0
    %486 = vmatpush1.msra.mxu0 %v417
    %487 = vmatprep.subr.mxu0 0.0
    %488 = vmatpush1.msra.mxu0 %v416
    %489 = vmatprep.subr.mxu0 0.0
    %490 = vmatpush1.msra.mxu0 %v415
    %491 = vmatprep.subr.mxu0 0.0
    %492 = vmatpush1.msra.mxu0 %v414
    %493 = vmatprep.subr.mxu0 0.0
    %494 = vmatpush1.msra.mxu0 %v413
    %495 = vmatprep.subr.mxu0 0.0
    %496 = vmatpush1.msra.mxu0 %v412
    %497 = vmatprep.subr.mxu0 0.0
    %498 = vmatpush1.msra.mxu0 %v411
    %499 = vmatprep.subr.mxu0 0.0
    %500 = vmatpush1.msra.mxu0 %v410
    %501 = vmatprep.subr.mxu0 0.0
    %502 = vmatpush1.msra.mxu0 %v409
    %503 = vmatprep.subr.mxu0 0.0
    %504 = vmatpush1.msra.mxu0 %v408
    %505 = vmatprep.subr.mxu0 0.0
    %506 = vmatpush1.msra.mxu0 %v407
    %507 = vmatprep.subr.mxu0 0.0
    %508 = vmatpush2.msra.mxu0 %v438
    %509 = vmatprep.subr.mxu0 0.0
    %510 = vmatpush2.msra.mxu0 %v437
    %511 = vmatprep.subr.mxu0 0.0
    %512 = vmatpush2.msra.mxu0 %v436
    %513 = vmatprep.subr.mxu0 0.0
    %514 = vmatpush2.msra.mxu0 %v435
    %515 = vmatprep.subr.mxu0 0.0
    %516 = vmatpush2.msra.mxu0 %v434
    %517 = vmatprep.subr.mxu0 0.0
    %518 = vmatpush2.msra.mxu0 %v433
    %519 = vmatprep.subr.mxu0 0.0
    %520 = vmatpush2.msra.mxu0 %v432
    %521 = vmatprep.subr.mxu0 0.0
    %522 = vmatpush2.msra.mxu0 %v431
    %523 = vmatprep.subr.mxu0 0.0
    %524 = vmatpush2.msra.mxu0 %v430
    %525 = vmatprep.subr.mxu0 0.0
    %526 = vmatpush2.msra.mxu0 %v429
    %527 = vmatprep.subr.mxu0 0.0
    %528 = vmatpush2.msra.mxu0 %v428
    %529 = vmatprep.subr.mxu0 0.0
    %530 = vmatpush2.msra.mxu0 %v427
    %531 = vmatprep.subr.mxu0 0.0
    %532 = vmatpush2.msra.mxu0 %v426
    %533 = vmatprep.subr.mxu0 0.0
    %534 = vmatpush2.msra.mxu0 %v425
    %535 = vmatprep.subr.mxu0 0.0
    %536 = vmatpush2.msra.mxu0 %v424
    %537 = vmatprep.subr.mxu0 0.0
    %538 = vmatpush2.msra.mxu0 %v423
    %539 = vmatprep.mubr.f32.mxu0 %v400
    %540 = vmatmul.mubr.f32.gmra.mxu0 %v399
    %v541 = vpop.f32.mrf.mxu0
    %v542 = vadd.f32 %v466, %v541
    %v543 = vpop.f32.mrf.mxu0
    %544 = vmatprep.mubr.f32.mxu0 %v404
    %545 = vmatmul.mubr.f32.gmra.mxu0 %v403
    %v546 = vpop.f32.mrf.mxu0
    %v547 = vadd.f32 %v466, %v546
    %v548 = vpop.f32.mrf.mxu0
    %549 = vdwg.mxu0
    %550 = vmatprep.subr.mxu0 0.0
    %551 = vmatpush1.msra.mxu0 %v454
    %552 = vmatprep.subr.mxu0 0.0
    %553 = vmatpush1.msra.mxu0 %v453
    %554 = vmatprep.subr.mxu0 0.0
    %555 = vmatpush1.msra.mxu0 %v452
    %556 = vmatprep.subr.mxu0 0.0
    %557 = vmatpush1.msra.mxu0 %v451
    %558 = vmatprep.subr.mxu0 0.0
    %559 = vmatpush1.msra.mxu0 %v450
    %560 = vmatprep.subr.mxu0 0.0
    %561 = vmatpush1.msra.mxu0 %v449
    %562 = vmatprep.subr.mxu0 0.0
    %563 = vmatpush1.msra.mxu0 %v448
    %564 = vmatprep.subr.mxu0 0.0
    %565 = vmatpush1.msra.mxu0 %v447
    %566 = vmatprep.subr.mxu0 0.0
    %567 = vmatpush1.msra.mxu0 %v446
    %568 = vmatprep.subr.mxu0 0.0
    %569 = vmatpush1.msra.mxu0 %v445
    %570 = vmatprep.subr.mxu0 0.0
    %571 = vmatpush1.msra.mxu0 %v444
    %572 = vmatprep.subr.mxu0 0.0
    %573 = vmatpush1.msra.mxu0 %v443
    %574 = vmatprep.subr.mxu0 0.0
    %575 = vmatpush1.msra.mxu0 %v442
    %576 = vmatprep.subr.mxu0 0.0
    %577 = vmatpush1.msra.mxu0 %v441
    %578 = vmatprep.subr.mxu0 0.0
    %579 = vmatpush1.msra.mxu0 %v440
    %580 = vmatprep.subr.mxu0 0.0
    %581 = vmatpush1.msra.mxu0 %v439
    %582 = vmatprep.subr.mxu0 0.0
    %583 = vmatpush2.msra.mxu0 0.0
    %584 = vmatprep.subr.mxu0 0.0
    %585 = vmatpush2.msra.mxu0 0.0
    %586 = vmatprep.subr.mxu0 0.0
    %587 = vmatpush2.msra.mxu0 0.0
    %588 = vmatprep.subr.mxu0 0.0
    %589 = vmatpush2.msra.mxu0 0.0
    %590 = vmatprep.subr.mxu0 0.0
    %591 = vmatpush2.msra.mxu0 0.0
    %592 = vmatprep.subr.mxu0 0.0
    %593 = vmatpush2.msra.mxu0 0.0
    %594 = vmatprep.subr.mxu0 0.0
    %595 = vmatpush2.msra.mxu0 0.0
    %596 = vmatprep.subr.mxu0 0.0
    %597 = vmatpush2.msra.mxu0 0.0
    %598 = vmatprep.subr.mxu0 0.0
    %599 = vmatpush2.msra.mxu0 0.0
    %600 = vmatprep.subr.mxu0 0.0
    %601 = vmatpush2.msra.mxu0 0.0
    %602 = vmatprep.subr.mxu0 0.0
    %603 = vmatpush2.msra.mxu0 %v460
    %604 = vmatprep.subr.mxu0 0.0
    %605 = vmatpush2.msra.mxu0 %v459
    %606 = vmatprep.subr.mxu0 0.0
    %607 = vmatpush2.msra.mxu0 %v458
    %608 = vmatprep.subr.mxu0 0.0
    %609 = vmatpush2.msra.mxu0 %v457
    %610 = vmatprep.subr.mxu0 0.0
    %611 = vmatpush2.msra.mxu0 %v456
    %612 = vmatprep.subr.mxu0 0.0
    %613 = vmatpush2.msra.mxu0 %v455
    %614 = vmatprep.mubr.f32.mxu0 %v470
    %615 = vmatmul.mubr.f32.gmra.mxu0 %v401
    %v616 = vpop.f32.mrf.mxu0
    %v617 = vadd.f32 %v542, %v616
    %v618 = vpop.f32.mrf.mxu0
    %619 = vmatprep.mubr.f32.mxu0 %v473
    %620 = vmatmul.mubr.f32.gmra.mxu0 %v405
    %v621 = vpop.f32.mrf.mxu0
    %v622 = vadd.f32 %v547, %v621
    %v623 = vpop.f32.mrf.mxu0
    %624 = vdwg.mxu0
    %v625 = vmax.f32 %v617, 0.0
    %v626 = vmax.f32 %v622, 0.0
    %v628 = vrot.slane %v625, 7
    %629 = vrot.lane.b32.xlu0 %v628, 16
    %v630 = vpop.permute.xlu0 %629
    %632 = vst.msk [vmem:[#allocation3] sm:$0xfe] %vm245, %v630
    %v634 = vrot.slane %v625, 5
    %v635 = vrot.slane %v626, 5
    %v636 = vsel %vm248, %v634, %v635
    %637 = vrot.lane.b32.xlu0 %v636, 16
    %v638 = vpop.permute.xlu0 %637
    %639 = vrot.lane.b32.xlu0 %v635, 16
    %v640 = vpop.permute.xlu0 %639
    %643 = vst.msk [vmem:[#allocation3 + $0x10] sm:$0xfc] %vm258, %v638
    %644 = vst.msk [vmem:[#allocation3 + $0x20] sm:$0x1] %vm260, %v640
    %v645 = vld [vmem:[#allocation3] sm:$0x7f]
    %v646 = vld [vmem:[#allocation3 + $0x8] sm:$0x7f]
    %647 = vst [vmem:[#allocation4] sm:$0x7f] %v645
    %648 = vst.msk [vmem:[#allocation4 + $0x8] sm:$0x7f] %vm265, %v646
    %v649 = vld [vmem:[#allocation3 + $0x10] sm:$0xfe]
    %v650 = vld [vmem:[#allocation3 + $0x18] sm:$0xfe]
    %v653 = vrot.slane %v649, 2
    %v654 = vrot.slane %v650, 2
    %657 = vst [vmem:[#allocation4] sm:$0x80] %v653
    %658 = vst.msk [vmem:[#allocation4 + $0x8] sm:$0x80] %vm276, %v654
    %659 = vst [vmem:[#allocation4 + $0x20] sm:$0x3f] %v653
    %660 = vst.msk [vmem:[#allocation4 + $0x28] sm:$0x3f] %vm279, %v654
    %v661 = vld [vmem:[#allocation3] sm:$0xfe]
    %v662 = vld [vmem:[#allocation3 + $0x8] sm:$0xfe]
    %v665 = vrot.slane %v661, 1
    %v666 = vrot.slane %v662, 1
    %667 = vrot.lane.b32.xlu0 %v665, 16
    %v668 = vpop.permute.xlu0 %667
    %669 = vrot.lane.b32.xlu0 %v666, 16
    %v670 = vpop.permute.xlu0 %669
    %v671 = vsel %vm233, %v668, %v670
    %674 = vst.msk [vmem:[#allocation4 + $0x8] sm:$0x7f] %vm294, %v668
    %675 = vst.msk [vmem:[#allocation4 + $0x10] sm:$0x7f] %vm296, %v671
    %v676 = vld [vmem:[#allocation3 + $0x10] sm:$0xfc]
    %v677 = vld [vmem:[#allocation3 + $0x18] sm:$0xfc]
    %v678 = vld [vmem:[#allocation3 + $0x20] sm:$0x1]
    %v679 = vld [vmem:[#allocation3 + $0x28] sm:$0x1]
    %v684 = vrot.slane %v676, 3
    %v685 = vrot.slane %v677, 3
    %v686 = vrot.slane %v678, 3
    %v687 = vsel %vm306, %v684, %v686
    %v688 = vrot.slane %v679, 3
    %v689 = vsel %vm306, %v685, %v688
    %690 = vrot.lane.b32.xlu0 %v684, 16
    %v691 = vpop.permute.xlu0 %690
    %692 = vrot.lane.b32.xlu0 %v685, 16
    %v693 = vpop.permute.xlu0 %692
    %694 = vrot.lane.b32.xlu0 %v687, 16
    %v695 = vpop.permute.xlu0 %694
    %696 = vrot.lane.b32.xlu0 %v689, 16
    %v697 = vpop.permute.xlu0 %696
    %v698 = vsel %vm233, %v691, %v693
    %v699 = vsel %vm233, %v695, %v697
    %704 = vst.msk [vmem:[#allocation4 + $0x8] sm:$0x80] %vm327, %v691
    %705 = vst.msk [vmem:[#allocation4 + $0x10] sm:$0x80] %vm329, %v698
    %706 = vst.msk [vmem:[#allocation4 + $0x28] sm:$0x3f] %vm331, %v695
    %707 = vst.msk [vmem:[#allocation4 + $0x30] sm:$0x3f] %vm333, %v699
    %v708 = vld [vmem:[#allocation3] sm:$0xfc]
    %v709 = vld [vmem:[#allocation3 + $0x8] sm:$0xfc]
    %v710 = vld [vmem:[#allocation3 + $0x10] sm:$0x1]
    %v711 = vld [vmem:[#allocation3 + $0x18] sm:$0x1]
    %v716 = vrot.slane %v708, 2
    %v717 = vrot.slane %v710, 2
    %v718 = vsel %vm343, %v716, %v717
    %v719 = vrot.slane %v709, 2
    %v720 = vrot.slane %v711, 2
    %v721 = vsel %vm343, %v719, %v720
    %722 = vrot.lane.b32.xlu0 %v718, 32
    %v723 = vpop.permute.xlu0 %722
    %724 = vrot.lane.b32.xlu0 %v721, 32
    %v725 = vpop.permute.xlu0 %724
    %v726 = vsel %vm354, %v723, %v725
    %729 = vst.msk [vmem:[#allocation4 + $0x10] sm:$0x7f] %vm358, %v723
    %730 = vst.msk [vmem:[#allocation4 + $0x18] sm:$0x7f] %vm360, %v726
    %v731 = vld [vmem:[#allocation3 + $0x10] sm:$0xf8]
    %v732 = vld [vmem:[#allocation3 + $0x18] sm:$0xf8]
    %v733 = vld [vmem:[#allocation3 + $0x20] sm:$0x3]
    %v734 = vld [vmem:[#allocation3 + $0x28] sm:$0x3]
    %v739 = vrot.slane %v731, 4
    %v740 = vrot.slane %v732, 4
    %v741 = vrot.slane %v733, 4
    %v742 = vsel %vm370, %v739, %v741
    %v743 = vrot.slane %v734, 4
    %v744 = vsel %vm370, %v740, %v743
    %745 = vrot.lane.b32.xlu0 %v739, 32
    %v746 = vpop.permute.xlu0 %745
    %747 = vrot.lane.b32.xlu0 %v740, 32
    %v748 = vpop.permute.xlu0 %747
    %749 = vrot.lane.b32.xlu0 %v742, 32
    %v750 = vpop.permute.xlu0 %749
    %751 = vrot.lane.b32.xlu0 %v744, 32
    %v752 = vpop.permute.xlu0 %751
    %v753 = vsel %vm354, %v746, %v748
    %v754 = vsel %vm354, %v750, %v752
    %759 = vst.msk [vmem:[#allocation4 + $0x10] sm:$0x80] %vm391, %v746
    %760 = vst.msk [vmem:[#allocation4 + $0x18] sm:$0x80] %vm393, %v753
    %761 = vst.msk [vmem:[#allocation4 + $0x30] sm:$0x3f] %vm395, %v750
    %762 = vst.msk [vmem:[#allocation4 + $0x38] sm:$0x3f] %vm397, %v754
    %v763 = vld [vmem:[#allocation4] sm:$0xff]
    %v764 = vld [vmem:[#allocation4 + $0x8] sm:$0xff]
    %v765 = vld [vmem:[#allocation4 + $0x10] sm:$0xff]
    %v766 = vld [vmem:[#allocation4 + $0x18] sm:$0xff]
    %v767 = vld [vmem:[#allocation4 + $0x20] sm:$0x3f]
    %v768 = vld [vmem:[#allocation4 + $0x28] sm:$0x3f]
    %v769 = vld [vmem:[#allocation4 + $0x30] sm:$0x3f]
    %v770 = vld [vmem:[#allocation4 + $0x38] sm:$0x3f]
    %v771 = vld [vmem:[#allocation7] sm:$0xff]
    %v772 = vld [vmem:[#allocation7 + $0x8] sm:$0xff]
    %v773 = vld [vmem:[#allocation7 + $0x10] sm:$0xff]
    %v774 = vld [vmem:[#allocation7 + $0x18] sm:$0xff]
    %v775 = vld [vmem:[#allocation7 + $0x20] sm:$0xff]
    %v776 = vld [vmem:[#allocation7 + $0x28] sm:$0xff]
    %v777 = vld [vmem:[#allocation7 + $0x30] sm:$0xff]
    %v778 = vld [vmem:[#allocation7 + $0x38] sm:$0xff]
    %v779 = vld [vmem:[#allocation7 + $0x40] sm:$0xff]
    %v780 = vld [vmem:[#allocation7 + $0x48] sm:$0xff]
    %v781 = vld [vmem:[#allocation7 + $0x50] sm:$0xff]
    %v782 = vld [vmem:[#allocation7 + $0x58] sm:$0xff]
    %v783 = vld [vmem:[#allocation7 + $0x60] sm:$0xff]
    %v784 = vld [vmem:[#allocation7 + $0x68] sm:$0xff]
    %v785 = vld [vmem:[#allocation7 + $0x70] sm:$0xff]
    %v786 = vld [vmem:[#allocation7 + $0x78] sm:$0xff]
    %v787 = vld [vmem:[#allocation7 + $0x80] sm:$0xff]
    %v788 = vld [vmem:[#allocation7 + $0x88] sm:$0xff]
    %v789 = vld [vmem:[#allocation7 + $0x90] sm:$0xff]
    %v790 = vld [vmem:[#allocation7 + $0x98] sm:$0xff]
    %v791 = vld [vmem:[#allocation7 + $0xa0] sm:$0xff]
    %v792 = vld [vmem:[#allocation7 + $0xa8] sm:$0xff]
    %v793 = vld [vmem:[#allocation7 + $0xb0] sm:$0xff]
    %v794 = vld [vmem:[#allocation7 + $0xb8] sm:$0xff]
    %v795 = vld [vmem:[#allocation7 + $0xc0] sm:$0xff]
    %v796 = vld [vmem:[#allocation7 + $0xc8] sm:$0xff]
    %v797 = vld [vmem:[#allocation7 + $0xd0] sm:$0xff]
    %v798 = vld [vmem:[#allocation7 + $0xd8] sm:$0xff]
    %v799 = vld [vmem:[#allocation7 + $0xe0] sm:$0xff]
    %v800 = vld [vmem:[#allocation7 + $0xe8] sm:$0xff]
    %v801 = vld [vmem:[#allocation7 + $0xf0] sm:$0xff]
    %v802 = vld [vmem:[#allocation7 + $0xf8] sm:$0xff]
    %v803 = vld [vmem:[#allocation7 + $0x100] sm:$0xff]
    %v804 = vld [vmem:[#allocation7 + $0x108] sm:$0xff]
    %v805 = vld [vmem:[#allocation7 + $0x110] sm:$0xff]
    %v806 = vld [vmem:[#allocation7 + $0x118] sm:$0xff]
    %v807 = vld [vmem:[#allocation7 + $0x120] sm:$0xff]
    %v808 = vld [vmem:[#allocation7 + $0x128] sm:$0xff]
    %v809 = vld [vmem:[#allocation7 + $0x130] sm:$0xff]
    %v810 = vld [vmem:[#allocation7 + $0x138] sm:$0xff]
    %v811 = vld [vmem:[#allocation7 + $0x140] sm:$0xff]
    %v812 = vld [vmem:[#allocation7 + $0x148] sm:$0xff]
    %v813 = vld [vmem:[#allocation7 + $0x150] sm:$0xff]
    %v814 = vld [vmem:[#allocation7 + $0x158] sm:$0xff]
    %v815 = vld [vmem:[#allocation7 + $0x160] sm:$0xff]
    %v816 = vld [vmem:[#allocation7 + $0x168] sm:$0xff]
    %v817 = vld [vmem:[#allocation7 + $0x170] sm:$0xff]
    %v818 = vld [vmem:[#allocation7 + $0x178] sm:$0xff]
    %v819 = vld [vmem:[#allocation7 + $0x180] sm:$0xff]
    %v820 = vld [vmem:[#allocation7 + $0x188] sm:$0xff]
    %v821 = vld [vmem:[#allocation7 + $0x190] sm:$0xff]
    %v822 = vld [vmem:[#allocation7 + $0x198] sm:$0xff]
    %v823 = vld [vmem:[#allocation7 + $0x1a0] sm:$0xff]
    %v824 = vld [vmem:[#allocation7 + $0x1a8] sm:$0xff]
    %v825 = vld [vmem:[#allocation7 + $0x1b0] sm:$0xff]
    %v826 = vld [vmem:[#allocation7 + $0x1b8] sm:$0xff]
    %v827 = vld [vmem:[#allocation7 + $0x1c0] sm:$0xff]
    %v828 = vld [vmem:[#allocation7 + $0x1c8] sm:$0xff]
    %v829 = vld [vmem:[#allocation7 + $0x1d0] sm:$0xff]
    %v830 = vld [vmem:[#allocation7 + $0x1d8] sm:$0xff]
    %v831 = vld [vmem:[#allocation7 + $0x1e0] sm:$0xff]
    %v832 = vld [vmem:[#allocation7 + $0x1e8] sm:$0xff]
    %v833 = vld [vmem:[#allocation7 + $0x1f0] sm:$0xff]
    %v834 = vld [vmem:[#allocation7 + $0x1f8] sm:$0xff]
    %v835 = vld [vmem:[#allocation7 + $0x200] sm:$0xff]
    %v836 = vld [vmem:[#allocation7 + $0x208] sm:$0xff]
    %v837 = vld [vmem:[#allocation7 + $0x210] sm:$0xff]
    %v838 = vld [vmem:[#allocation7 + $0x218] sm:$0xff]
    %v839 = vld [vmem:[#allocation7 + $0x220] sm:$0xff]
    %v840 = vld [vmem:[#allocation7 + $0x228] sm:$0xff]
    %v841 = vld [vmem:[#allocation7 + $0x230] sm:$0xff]
    %v842 = vld [vmem:[#allocation7 + $0x238] sm:$0xff]
    %v843 = vld [vmem:[#allocation7 + $0x240] sm:$0xff]
    %v844 = vld [vmem:[#allocation7 + $0x248] sm:$0xff]
    %v845 = vld [vmem:[#allocation7 + $0x250] sm:$0xff]
    %v846 = vld [vmem:[#allocation7 + $0x258] sm:$0xff]
    %v847 = vld [vmem:[#allocation7 + $0x260] sm:$0xff]
    %v848 = vld [vmem:[#allocation7 + $0x268] sm:$0xff]
    %v849 = vld [vmem:[#allocation7 + $0x270] sm:$0xff]
    %v850 = vld [vmem:[#allocation7 + $0x278] sm:$0xff]
    %v851 = vld [vmem:[#allocation7 + $0x280] sm:$0xff]
    %v852 = vld [vmem:[#allocation7 + $0x288] sm:$0xff]
    %v853 = vld [vmem:[#allocation7 + $0x290] sm:$0xff]
    %v854 = vld [vmem:[#allocation7 + $0x298] sm:$0xff]
    %v855 = vld [vmem:[#allocation7 + $0x2a0] sm:$0xff]
    %v856 = vld [vmem:[#allocation7 + $0x2a8] sm:$0xff]
    %v857 = vld [vmem:[#allocation7 + $0x2b0] sm:$0xff]
    %v858 = vld [vmem:[#allocation7 + $0x2b8] sm:$0xff]
    %v859 = vld [vmem:[#allocation7 + $0x2c0] sm:$0xff]
    %v860 = vld [vmem:[#allocation7 + $0x2c8] sm:$0xff]
    %v861 = vld [vmem:[#allocation7 + $0x2d0] sm:$0xff]
    %v862 = vld [vmem:[#allocation7 + $0x2d8] sm:$0xff]
    %v863 = vld [vmem:[#allocation7 + $0x2e0] sm:$0xff]
    %v864 = vld [vmem:[#allocation7 + $0x2e8] sm:$0xff]
    %v865 = vld [vmem:[#allocation7 + $0x2f0] sm:$0xff]
    %v866 = vld [vmem:[#allocation7 + $0x2f8] sm:$0xff]
    %v867 = vld [vmem:[#allocation7 + $0x300] sm:$0xff]
    %v868 = vld [vmem:[#allocation7 + $0x308] sm:$0xff]
    %v869 = vld [vmem:[#allocation7 + $0x310] sm:$0xff]
    %v870 = vld [vmem:[#allocation7 + $0x318] sm:$0xff]
    %v871 = vld [vmem:[#allocation7 + $0x320] sm:$0xff]
    %v872 = vld [vmem:[#allocation7 + $0x328] sm:$0xff]
    %v873 = vld [vmem:[#allocation7 + $0x330] sm:$0xff]
    %v874 = vld [vmem:[#allocation7 + $0x338] sm:$0xff]
    %v875 = vld [vmem:[#allocation7 + $0x340] sm:$0xff]
    %v876 = vld [vmem:[#allocation7 + $0x348] sm:$0xff]
    %v877 = vld [vmem:[#allocation7 + $0x350] sm:$0xff]
    %v878 = vld [vmem:[#allocation7 + $0x358] sm:$0xff]
    %v879 = vld [vmem:[%s5] sm:$0x3]
    %v881 = vlaneseq
    %v882 = vshrl.u32 %v881, 7
    %v883 = vsub.s32 0, %v882
    %v884 = vrot.slane %v879, %v883
    %v885 = vlaneseq
    %v886 = vshrl.u32 %v885, 7
    %v887 = vsub.s32 1, %v886
    %v888 = vrot.slane %v879, %v887
    %v892 = vsel %vm468, %v766, 0
    %v895 = vsel %vm468, %v770, 0
    %897 = vmatprep.subr.mxu0 %v802
    %898 = vmatpush1.msra.mxu0 %v801
    %899 = vmatprep.subr.mxu0 %v800
    %900 = vmatpush1.msra.mxu0 %v799
    %901 = vmatprep.subr.mxu0 %v798
    %902 = vmatpush1.msra.mxu0 %v797
    %903 = vmatprep.subr.mxu0 %v796
    %904 = vmatpush1.msra.mxu0 %v795
    %905 = vmatprep.subr.mxu0 %v794
    %906 = vmatpush1.msra.mxu0 %v793
    %907 = vmatprep.subr.mxu0 %v792
    %908 = vmatpush1.msra.mxu0 %v791
    %909 = vmatprep.subr.mxu0 %v790
    %910 = vmatpush1.msra.mxu0 %v789
    %911 = vmatprep.subr.mxu0 %v788
    %912 = vmatpush1.msra.mxu0 %v787
    %913 = vmatprep.subr.mxu0 %v786
    %914 = vmatpush1.msra.mxu0 %v785
    %915 = vmatprep.subr.mxu0 %v784
    %916 = vmatpush1.msra.mxu0 %v783
    %917 = vmatprep.subr.mxu0 %v782
    %918 = vmatpush1.msra.mxu0 %v781
    %919 = vmatprep.subr.mxu0 %v780
    %920 = vmatpush1.msra.mxu0 %v779
    %921 = vmatprep.subr.mxu0 %v778
    %922 = vmatpush1.msra.mxu0 %v777
    %923 = vmatprep.subr.mxu0 %v776
    %924 = vmatpush1.msra.mxu0 %v775
    %925 = vmatprep.subr.mxu0 %v774
    %926 = vmatpush1.msra.mxu0 %v773
    %927 = vmatprep.subr.mxu0 %v772
    %928 = vmatpush1.msra.mxu0 %v771
    %929 = vmatprep.subr.mxu0 %v834
    %930 = vmatpush2.msra.mxu0 %v833
    %931 = vmatprep.subr.mxu0 %v832
    %932 = vmatpush2.msra.mxu0 %v831
    %933 = vmatprep.subr.mxu0 %v830
    %934 = vmatpush2.msra.mxu0 %v829
    %935 = vmatprep.subr.mxu0 %v828
    %936 = vmatpush2.msra.mxu0 %v827
    %937 = vmatprep.subr.mxu0 %v826
    %938 = vmatpush2.msra.mxu0 %v825
    %939 = vmatprep.subr.mxu0 %v824
    %940 = vmatpush2.msra.mxu0 %v823
    %941 = vmatprep.subr.mxu0 %v822
    %942 = vmatpush2.msra.mxu0 %v821
    %943 = vmatprep.subr.mxu0 %v820
    %944 = vmatpush2.msra.mxu0 %v819
    %945 = vmatprep.subr.mxu0 %v818
    %946 = vmatpush2.msra.mxu0 %v817
    %947 = vmatprep.subr.mxu0 %v816
    %948 = vmatpush2.msra.mxu0 %v815
    %949 = vmatprep.subr.mxu0 %v814
    %950 = vmatpush2.msra.mxu0 %v813
    %951 = vmatprep.subr.mxu0 %v812
    %952 = vmatpush2.msra.mxu0 %v811
    %953 = vmatprep.subr.mxu0 %v810
    %954 = vmatpush2.msra.mxu0 %v809
    %955 = vmatprep.subr.mxu0 %v808
    %956 = vmatpush2.msra.mxu0 %v807
    %957 = vmatprep.subr.mxu0 %v806
    %958 = vmatpush2.msra.mxu0 %v805
    %959 = vmatprep.subr.mxu0 %v804
    %960 = vmatpush2.msra.mxu0 %v803
    %961 = vmatprep.mubr.f32.mxu0 %v764
    %962 = vmatmul.mubr.f32.gmra.mxu0 %v763
    %v963 = vpop.f32.mrf.mxu0
    %v964 = vadd.f32 %v884, %v963
    %v965 = vpop.f32.mrf.mxu0
    %v966 = vadd.f32 %v888, %v965
    %967 = vmatprep.mubr.f32.mxu0 %v768
    %968 = vmatmul.mubr.f32.gmra.mxu0 %v767
    %v969 = vpop.f32.mrf.mxu0
    %v970 = vadd.f32 %v884, %v969
    %v971 = vpop.f32.mrf.mxu0
    %v972 = vadd.f32 %v888, %v971
    %973 = vdwg.mxu0
    %974 = vmatprep.subr.mxu0 %v866
    %975 = vmatpush1.msra.mxu0 %v865
    %976 = vmatprep.subr.mxu0 %v864
    %977 = vmatpush1.msra.mxu0 %v863
    %978 = vmatprep.subr.mxu0 %v862
    %979 = vmatpush1.msra.mxu0 %v861
    %980 = vmatprep.subr.mxu0 %v860
    %981 = vmatpush1.msra.mxu0 %v859
    %982 = vmatprep.subr.mxu0 %v858
    %983 = vmatpush1.msra.mxu0 %v857
    %984 = vmatprep.subr.mxu0 %v856
    %985 = vmatpush1.msra.mxu0 %v855
    %986 = vmatprep.subr.mxu0 %v854
    %987 = vmatpush1.msra.mxu0 %v853
    %988 = vmatprep.subr.mxu0 %v852
    %989 = vmatpush1.msra.mxu0 %v851
    %990 = vmatprep.subr.mxu0 %v850
    %991 = vmatpush1.msra.mxu0 %v849
    %992 = vmatprep.subr.mxu0 %v848
    %993 = vmatpush1.msra.mxu0 %v847
    %994 = vmatprep.subr.mxu0 %v846
    %995 = vmatpush1.msra.mxu0 %v845
    %996 = vmatprep.subr.mxu0 %v844
    %997 = vmatpush1.msra.mxu0 %v843
    %998 = vmatprep.subr.mxu0 %v842
    %999 = vmatpush1.msra.mxu0 %v841
    %1000 = vmatprep.subr.mxu0 %v840
    %1001 = vmatpush1.msra.mxu0 %v839
    %1002 = vmatprep.subr.mxu0 %v838
    %1003 = vmatpush1.msra.mxu0 %v837
    %1004 = vmatprep.subr.mxu0 %v836
    %1005 = vmatpush1.msra.mxu0 %v835
    %1006 = vmatprep.subr.mxu0 0.0
    %1007 = vmatpush2.msra.mxu0 0.0
    %1008 = vmatprep.subr.mxu0 0.0
    %1009 = vmatpush2.msra.mxu0 0.0
    %1010 = vmatprep.subr.mxu0 0.0
    %1011 = vmatpush2.msra.mxu0 0.0
    %1012 = vmatprep.subr.mxu0 0.0
    %1013 = vmatpush2.msra.mxu0 0.0
    %1014 = vmatprep.subr.mxu0 0.0
    %1015 = vmatpush2.msra.mxu0 0.0
    %1016 = vmatprep.subr.mxu0 0.0
    %1017 = vmatpush2.msra.mxu0 0.0
    %1018 = vmatprep.subr.mxu0 0.0
    %1019 = vmatpush2.msra.mxu0 0.0
    %1020 = vmatprep.subr.mxu0 0.0
    %1021 = vmatpush2.msra.mxu0 0.0
    %1022 = vmatprep.subr.mxu0 0.0
    %1023 = vmatpush2.msra.mxu0 0.0
    %1024 = vmatprep.subr.mxu0 0.0
    %1025 = vmatpush2.msra.mxu0 0.0
    %1026 = vmatprep.subr.mxu0 %v878
    %1027 = vmatpush2.msra.mxu0 %v877
    %1028 = vmatprep.subr.mxu0 %v876
    %1029 = vmatpush2.msra.mxu0 %v875
    %1030 = vmatprep.subr.mxu0 %v874
    %1031 = vmatpush2.msra.mxu0 %v873
    %1032 = vmatprep.subr.mxu0 %v872
    %1033 = vmatpush2.msra.mxu0 %v871
    %1034 = vmatprep.subr.mxu0 %v870
    %1035 = vmatpush2.msra.mxu0 %v869
    %1036 = vmatprep.subr.mxu0 %v868
    %1037 = vmatpush2.msra.mxu0 %v867
    %1038 = vmatprep.mubr.f32.mxu0 %v892
    %1039 = vmatmul.mubr.f32.gmra.mxu0 %v765
    %v1040 = vpop.f32.mrf.mxu0
    %v1041 = vadd.f32 %v964, %v1040
    %v1042 = vpop.f32.mrf.mxu0
    %v1043 = vadd.f32 %v966, %v1042
    %1044 = vmatprep.mubr.f32.mxu0 %v895
    %1045 = vmatmul.mubr.f32.gmra.mxu0 %v769
    %v1046 = vpop.f32.mrf.mxu0
    %v1047 = vadd.f32 %v970, %v1046
    %v1048 = vpop.f32.mrf.mxu0
    %v1049 = vadd.f32 %v972, %v1048
    %1050 = vdwg.mxu0
    %v1051 = vmax.f32 %v1041, 0.0
    %v1052 = vmax.f32 %v1043, 0.0
    %v1053 = vmax.f32 %v1047, 0.0
    %v1054 = vmax.f32 %v1049, 0.0
    %1055 = vst [vmem:[#allocation5] sm:$0xff] 0.0
    %1056 = vst [vmem:[#allocation5 + $0x8] sm:$0xff] 0.0
    %1057 = vst [vmem:[#allocation5 + $0x10] sm:$0xff] 0.0
    %1058 = vst [vmem:[#allocation5 + $0x18] sm:$0xff] 0.0
    %1060 = vrot.lane.b32.xlu0 %v1051, 8
    %v1061 = vpop.permute.xlu0 %1060
    %vm1063 = vcmask 974912
    %1064 = vst.msk [vmem:[#allocation5 + $0x1] sm:$0x1] %vm1063, %v1061
    %1066 = vrot.lane.b32.xlu0 %v1051, 24
    %v1067 = vpop.permute.xlu0 %1066
    %1068 = vrot.lane.b32.xlu0 %v1052, 24
    %v1069 = vpop.permute.xlu0 %1068
    %vm1070 = vcmask 195584
    %v1071 = vsel %vm1070, %v1067, %v1069
    %1073 = vst.msk [vmem:[#allocation5 + $0x2] sm:$0x1] %vm1063, %v1071
    %vm1074 = vcmask 975937
    %1075 = vst.msk [vmem:[#allocation5 + $0x2] sm:$0x2] %vm1074, %v1061
    %1076 = vst.msk [vmem:[#allocation5 + $0x3] sm:$0x2] %vm1074, %v1071
    %vm1077 = vcmask 976962
    %1078 = vst.msk [vmem:[#allocation5 + $0x3] sm:$0x4] %vm1077, %v1061
    %1079 = vst.msk [vmem:[#allocation5 + $0x4] sm:$0x4] %vm1077, %v1071
    %vm1080 = vcmask 977987
    %1081 = vst.msk [vmem:[#allocation5 + $0x4] sm:$0x8] %vm1080, %v1061
    %1082 = vst.msk [vmem:[#allocation5 + $0x5] sm:$0x8] %vm1080, %v1071
    %vm1083 = vcmask 979012
    %1084 = vst.msk [vmem:[#allocation5 + $0x5] sm:$0x10] %vm1083, %v1061
    %1085 = vst.msk [vmem:[#allocation5 + $0x6] sm:$0x10] %vm1083, %v1071
    %vm1086 = vcmask 980037
    %1087 = vst.msk [vmem:[#allocation5 + $0x6] sm:$0x20] %vm1086, %v1061
    %1088 = vst.msk [vmem:[#allocation5 + $0x7] sm:$0x20] %vm1086, %v1071
    %vm1089 = vcmask 981062
    %1090 = vst.msk [vmem:[#allocation5 + $0x7] sm:$0x40] %vm1089, %v1061
    %1091 = vst.msk [vmem:[#allocation5 + $0x8] sm:$0x40] %vm1089, %v1071
    %vm1092 = vcmask 982087
    %1093 = vst.msk [vmem:[#allocation5 + $0xa] sm:$0x80] %vm1092, %v1061
    %1094 = vst.msk [vmem:[#allocation5 + $0xb] sm:$0x80] %vm1092, %v1071
    %1096 = vrot.lane.b32.xlu0 %v1053, 8
    %v1097 = vpop.permute.xlu0 %1096
    %1099 = vst.msk [vmem:[#allocation5 + $0x13] sm:$0x1] %vm1063, %v1097
    %1101 = vrot.lane.b32.xlu0 %v1053, 24
    %v1102 = vpop.permute.xlu0 %1101
    %1103 = vrot.lane.b32.xlu0 %v1054, 24
    %v1104 = vpop.permute.xlu0 %1103
    %v1105 = vsel %vm1070, %v1102, %v1104
    %1107 = vst.msk [vmem:[#allocation5 + $0x14] sm:$0x1] %vm1063, %v1105
    %1108 = vst.msk [vmem:[#allocation5 + $0x14] sm:$0x2] %vm1074, %v1097
    %1109 = vst.msk [vmem:[#allocation5 + $0x15] sm:$0x2] %vm1074, %v1105
    %1110 = vst.msk [vmem:[#allocation5 + $0x15] sm:$0x4] %vm1077, %v1097
    %1111 = vst.msk [vmem:[#allocation5 + $0x16] sm:$0x4] %vm1077, %v1105
    %1112 = vst.msk [vmem:[#allocation5 + $0x16] sm:$0x8] %vm1080, %v1097
    %1113 = vst.msk [vmem:[#allocation5 + $0x17] sm:$0x8] %vm1080, %v1105
    %1114 = vst.msk [vmem:[#allocation5 + $0x17] sm:$0x10] %vm1083, %v1097
    %1115 = vst.msk [vmem:[#allocation5 + $0x18] sm:$0x10] %vm1083, %v1105
    %1116 = vst.msk [vmem:[#allocation5 + $0x18] sm:$0x20] %vm1086, %v1097
    %1117 = vst.msk [vmem:[#allocation5 + $0x19] sm:$0x20] %vm1086, %v1105
    %v1118 = vld [vmem:[#allocation5] sm:$0xff]
    %v1119 = vld [vmem:[#allocation5 + $0x8] sm:$0x3f]
    %1120 = vst [vmem:[#allocation6] sm:$0xff] %v1118
    %1121 = vst [vmem:[#allocation6 + $0x18] sm:$0x3f] %v1119
    %v1122 = vld [vmem:[#allocation5 + $0x10] sm:$0xff]
    %v1123 = vld [vmem:[#allocation5 + $0x18] sm:$0x3f]
    %v1126 = vrot.slane %v1122, 2
    %v1127 = vrot.slane %v1123, 2
    %v1128 = vsel %vm343, %v1126, %v1127
    %1132 = vst [vmem:[#allocation6 + $0x18] sm:$0xc0] %v1126
    %1133 = vst [vmem:[#allocation6 + $0x30] sm:$0xff] %v1128
    %1134 = vst [vmem:[#allocation6 + $0x48] sm:$0xf] %v1127
    %v1135 = vld [vmem:[#allocation5 + $0x1] sm:$0xff]
    %v1136 = vld [vmem:[#allocation5 + $0x9] sm:$0x3f]
    %1137 = vst [vmem:[#allocation6 + $0x8] sm:$0xff] %v1135
    %1138 = vst [vmem:[#allocation6 + $0x20] sm:$0x3f] %v1136
    %v1139 = vld [vmem:[#allocation5 + $0x11] sm:$0xff]
    %v1140 = vld [vmem:[#allocation5 + $0x19] sm:$0x3f]
    %v1143 = vrot.slane %v1139, 2
    %v1144 = vrot.slane %v1140, 2
    %v1145 = vsel %vm343, %v1143, %v1144
    %1149 = vst [vmem:[#allocation6 + $0x20] sm:$0xc0] %v1143
    %1150 = vst [vmem:[#allocation6 + $0x38] sm:$0xff] %v1145
    %1151 = vst [vmem:[#allocation6 + $0x50] sm:$0xf] %v1144
    %v1152 = vld [vmem:[#allocation5 + $0x2] sm:$0xff]
    %v1153 = vld [vmem:[#allocation5 + $0xa] sm:$0x3f]
    %1154 = vst [vmem:[#allocation6 + $0x10] sm:$0xff] %v1152
    %1155 = vst [vmem:[#allocation6 + $0x28] sm:$0x3f] %v1153
    %v1156 = vld [vmem:[#allocation5 + $0x12] sm:$0xff]
    %v1157 = vld [vmem:[#allocation5 + $0x1a] sm:$0x3f]
    %v1160 = vrot.slane %v1156, 2
    %v1161 = vrot.slane %v1157, 2
    %v1162 = vsel %vm343, %v1160, %v1161
    %1166 = vst [vmem:[#allocation6 + $0x28] sm:$0xc0] %v1160
    %1167 = vst [vmem:[#allocation6 + $0x40] sm:$0xff] %v1162
    %1168 = vst [vmem:[#allocation6 + $0x58] sm:$0xf] %v1161
    %v1169 = vld [vmem:[#allocation6] sm:$0xff]
    %v1170 = vld [vmem:[#allocation6 + $0x8] sm:$0xff]
    %v1171 = vld [vmem:[#allocation6 + $0x10] sm:$0xff]
    %v1172 = vld [vmem:[#allocation6 + $0x18] sm:$0xff]
    %v1173 = vld [vmem:[#allocation6 + $0x20] sm:$0xff]
    %v1174 = vld [vmem:[#allocation6 + $0x28] sm:$0xff]
    %v1175 = vld [vmem:[#allocation6 + $0x30] sm:$0xff]
    %v1176 = vld [vmem:[#allocation6 + $0x38] sm:$0xff]
    %v1177 = vld [vmem:[#allocation6 + $0x40] sm:$0xff]
    %v1178 = vld [vmem:[#allocation6 + $0x48] sm:$0xf]
    %v1179 = vld [vmem:[#allocation6 + $0x50] sm:$0xf]
    %v1180 = vld [vmem:[#allocation6 + $0x58] sm:$0xf]
    %v1181 = vld [vmem:[%s6] sm:$0xff]
    %v1182 = vld [vmem:[%s6 + $0x8] sm:$0xff]
    %v1183 = vld [vmem:[%s6 + $0x10] sm:$0xff]
    %v1184 = vld [vmem:[%s6 + $0x18] sm:$0xff]
    %v1185 = vld [vmem:[%s6 + $0x20] sm:$0xff]
    %v1186 = vld [vmem:[%s6 + $0x28] sm:$0xff]
    %v1187 = vld [vmem:[%s6 + $0x30] sm:$0xff]
    %v1188 = vld [vmem:[%s6 + $0x38] sm:$0xff]
    %v1189 = vld [vmem:[%s6 + $0x40] sm:$0xff]
    %v1190 = vld [vmem:[%s6 + $0x48] sm:$0xff]
    %v1191 = vld [vmem:[%s6 + $0x50] sm:$0xff]
    %v1192 = vld [vmem:[%s6 + $0x58] sm:$0xff]
    %v1193 = vld [vmem:[%s6 + $0x60] sm:$0xff]
    %v1194 = vld [vmem:[%s6 + $0x68] sm:$0xff]
    %v1195 = vld [vmem:[%s6 + $0x70] sm:$0xff]
    %v1196 = vld [vmem:[%s6 + $0x78] sm:$0xff]
    %v1197 = vld [vmem:[%s6 + $0x80] sm:$0xff]
    %v1198 = vld [vmem:[%s6 + $0x88] sm:$0xff]
    %v1199 = vld [vmem:[%s6 + $0x90] sm:$0xff]
    %v1200 = vld [vmem:[%s6 + $0x98] sm:$0xff]
    %v1201 = vld [vmem:[%s6 + $0xa0] sm:$0xff]
    %v1202 = vld [vmem:[%s6 + $0xa8] sm:$0xff]
    %v1203 = vld [vmem:[%s6 + $0xb0] sm:$0xff]
    %v1204 = vld [vmem:[%s6 + $0xb8] sm:$0xff]
    %v1205 = vld [vmem:[%s6 + $0xc0] sm:$0xff]
    %v1206 = vld [vmem:[%s6 + $0xc8] sm:$0xff]
    %v1207 = vld [vmem:[%s6 + $0xd0] sm:$0xff]
    %v1208 = vld [vmem:[%s6 + $0xd8] sm:$0xff]
    %v1209 = vld [vmem:[%s6 + $0xe0] sm:$0xff]
    %v1210 = vld [vmem:[%s6 + $0xe8] sm:$0xff]
    %v1211 = vld [vmem:[%s6 + $0xf0] sm:$0xff]
    %v1212 = vld [vmem:[%s6 + $0xf8] sm:$0xff]
    %v1213 = vld [vmem:[%s6 + $0x100] sm:$0xff]
    %v1214 = vld [vmem:[%s6 + $0x108] sm:$0xff]
    %v1215 = vld [vmem:[%s6 + $0x110] sm:$0xff]
    %v1216 = vld [vmem:[%s6 + $0x118] sm:$0xff]
    %v1217 = vld [vmem:[%s6 + $0x120] sm:$0xff]
    %v1218 = vld [vmem:[%s6 + $0x128] sm:$0xff]
    %v1219 = vld [vmem:[%s6 + $0x130] sm:$0xff]
    %v1220 = vld [vmem:[%s6 + $0x138] sm:$0xff]
    %v1221 = vld [vmem:[%s6 + $0x140] sm:$0xff]
    %v1222 = vld [vmem:[%s6 + $0x148] sm:$0xff]
    %v1223 = vld [vmem:[%s6 + $0x150] sm:$0xff]
    %v1224 = vld [vmem:[%s6 + $0x158] sm:$0xff]
    %v1225 = vld [vmem:[%s6 + $0x160] sm:$0xff]
    %v1226 = vld [vmem:[%s6 + $0x168] sm:$0xff]
    %v1227 = vld [vmem:[%s6 + $0x170] sm:$0xff]
    %v1228 = vld [vmem:[%s6 + $0x178] sm:$0xff]
    %v1229 = vld [vmem:[%s7] sm:$0x1]
    %v1231 = vlaneseq
    %v1232 = vshrl.u32 %v1231, 7
    %v1233 = vsub.s32 0, %v1232
    %v1234 = vrot.slane %v1229, %v1233
    %1236 = vmatprep.subr.mxu0 0.0
    %1237 = vmatpush1.msra.mxu0 %v1196
    %1238 = vmatprep.subr.mxu0 0.0
    %1239 = vmatpush1.msra.mxu0 %v1195
    %1240 = vmatprep.subr.mxu0 0.0
    %1241 = vmatpush1.msra.mxu0 %v1194
    %1242 = vmatprep.subr.mxu0 0.0
    %1243 = vmatpush1.msra.mxu0 %v1193
    %1244 = vmatprep.subr.mxu0 0.0
    %1245 = vmatpush1.msra.mxu0 %v1192
    %1246 = vmatprep.subr.mxu0 0.0
    %1247 = vmatpush1.msra.mxu0 %v1191
    %1248 = vmatprep.subr.mxu0 0.0
    %1249 = vmatpush1.msra.mxu0 %v1190
    %1250 = vmatprep.subr.mxu0 0.0
    %1251 = vmatpush1.msra.mxu0 %v1189
    %1252 = vmatprep.subr.mxu0 0.0
    %1253 = vmatpush1.msra.mxu0 %v1188
    %1254 = vmatprep.subr.mxu0 0.0
    %1255 = vmatpush1.msra.mxu0 %v1187
    %1256 = vmatprep.subr.mxu0 0.0
    %1257 = vmatpush1.msra.mxu0 %v1186
    %1258 = vmatprep.subr.mxu0 0.0
    %1259 = vmatpush1.msra.mxu0 %v1185
    %1260 = vmatprep.subr.mxu0 0.0
    %1261 = vmatpush1.msra.mxu0 %v1184
    %1262 = vmatprep.subr.mxu0 0.0
    %1263 = vmatpush1.msra.mxu0 %v1183
    %1264 = vmatprep.subr.mxu0 0.0
    %1265 = vmatpush1.msra.mxu0 %v1182
    %1266 = vmatprep.subr.mxu0 0.0
    %1267 = vmatpush1.msra.mxu0 %v1181
    %1268 = vmatprep.subr.mxu0 0.0
    %1269 = vmatpush2.msra.mxu0 %v1212
    %1270 = vmatprep.subr.mxu0 0.0
    %1271 = vmatpush2.msra.mxu0 %v1211
    %1272 = vmatprep.subr.mxu0 0.0
    %1273 = vmatpush2.msra.mxu0 %v1210
    %1274 = vmatprep.subr.mxu0 0.0
    %1275 = vmatpush2.msra.mxu0 %v1209
    %1276 = vmatprep.subr.mxu0 0.0
    %1277 = vmatpush2.msra.mxu0 %v1208
    %1278 = vmatprep.subr.mxu0 0.0
    %1279 = vmatpush2.msra.mxu0 %v1207
    %1280 = vmatprep.subr.mxu0 0.0
    %1281 = vmatpush2.msra.mxu0 %v1206
    %1282 = vmatprep.subr.mxu0 0.0
    %1283 = vmatpush2.msra.mxu0 %v1205
    %1284 = vmatprep.subr.mxu0 0.0
    %1285 = vmatpush2.msra.mxu0 %v1204
    %1286 = vmatprep.subr.mxu0 0.0
    %1287 = vmatpush2.msra.mxu0 %v1203
    %1288 = vmatprep.subr.mxu0 0.0
    %1289 = vmatpush2.msra.mxu0 %v1202
    %1290 = vmatprep.subr.mxu0 0.0
    %1291 = vmatpush2.msra.mxu0 %v1201
    %1292 = vmatprep.subr.mxu0 0.0
    %1293 = vmatpush2.msra.mxu0 %v1200
    %1294 = vmatprep.subr.mxu0 0.0
    %1295 = vmatpush2.msra.mxu0 %v1199
    %1296 = vmatprep.subr.mxu0 0.0
    %1297 = vmatpush2.msra.mxu0 %v1198
    %1298 = vmatprep.subr.mxu0 0.0
    %1299 = vmatpush2.msra.mxu0 %v1197
    %1300 = vmatprep.mubr.f32.mxu0 %v1170
    %1301 = vmatmul.mubr.f32.gmra.mxu0 %v1169
    %v1302 = vpop.f32.mrf.mxu0
    %v1303 = vadd.f32 %v1234, %v1302
    %v1304 = vpop.f32.mrf.mxu0
    %1305 = vmatprep.mubr.f32.mxu0 %v1173
    %1306 = vmatmul.mubr.f32.gmra.mxu0 %v1172
    %v1307 = vpop.f32.mrf.mxu0
    %v1308 = vadd.f32 %v1234, %v1307
    %v1309 = vpop.f32.mrf.mxu0
    %1310 = vmatprep.mubr.f32.mxu0 %v1176
    %1311 = vmatmul.mubr.f32.gmra.mxu0 %v1175
    %v1312 = vpop.f32.mrf.mxu0
    %v1313 = vadd.f32 %v1234, %v1312
    %v1314 = vpop.f32.mrf.mxu0
    %1315 = vmatprep.mubr.f32.mxu0 %v1179
    %1316 = vmatmul.mubr.f32.gmra.mxu0 %v1178
    %v1317 = vpop.f32.mrf.mxu0
    %v1318 = vadd.f32 %v1234, %v1317
    %v1319 = vpop.f32.mrf.mxu0
    %1320 = vdwg.mxu0
    %1321 = vmatprep.subr.mxu0 0.0
    %1322 = vmatpush1.msra.mxu0 %v1228
    %1323 = vmatprep.subr.mxu0 0.0
    %1324 = vmatpush1.msra.mxu0 %v1227
    %1325 = vmatprep.subr.mxu0 0.0
    %1326 = vmatpush1.msra.mxu0 %v1226
    %1327 = vmatprep.subr.mxu0 0.0
    %1328 = vmatpush1.msra.mxu0 %v1225
    %1329 = vmatprep.subr.mxu0 0.0
    %1330 = vmatpush1.msra.mxu0 %v1224
    %1331 = vmatprep.subr.mxu0 0.0
    %1332 = vmatpush1.msra.mxu0 %v1223
    %1333 = vmatprep.subr.mxu0 0.0
    %1334 = vmatpush1.msra.mxu0 %v1222
    %1335 = vmatprep.subr.mxu0 0.0
    %1336 = vmatpush1.msra.mxu0 %v1221
    %1337 = vmatprep.subr.mxu0 0.0
    %1338 = vmatpush1.msra.mxu0 %v1220
    %1339 = vmatprep.subr.mxu0 0.0
    %1340 = vmatpush1.msra.mxu0 %v1219
    %1341 = vmatprep.subr.mxu0 0.0
    %1342 = vmatpush1.msra.mxu0 %v1218
    %1343 = vmatprep.subr.mxu0 0.0
    %1344 = vmatpush1.msra.mxu0 %v1217
    %1345 = vmatprep.subr.mxu0 0.0
    %1346 = vmatpush1.msra.mxu0 %v1216
    %1347 = vmatprep.subr.mxu0 0.0
    %1348 = vmatpush1.msra.mxu0 %v1215
    %1349 = vmatprep.subr.mxu0 0.0
    %1350 = vmatpush1.msra.mxu0 %v1214
    %1351 = vmatprep.subr.mxu0 0.0
    %1352 = vmatpush1.msra.mxu0 %v1213
    %1353 = vmatprep.subr.mxu0 0.0
    %1354 = vmatpush2.msra.mxu0 0.0
    %1355 = vmatprep.subr.mxu0 0.0
    %1356 = vmatpush2.msra.mxu0 0.0
    %1357 = vmatprep.subr.mxu0 0.0
    %1358 = vmatpush2.msra.mxu0 0.0
    %1359 = vmatprep.subr.mxu0 0.0
    %1360 = vmatpush2.msra.mxu0 0.0
    %1361 = vmatprep.subr.mxu0 0.0
    %1362 = vmatpush2.msra.mxu0 0.0
    %1363 = vmatprep.subr.mxu0 0.0
    %1364 = vmatpush2.msra.mxu0 0.0
    %1365 = vmatprep.subr.mxu0 0.0
    %1366 = vmatpush2.msra.mxu0 0.0
    %1367 = vmatprep.subr.mxu0 0.0
    %1368 = vmatpush2.msra.mxu0 0.0
    %1369 = vmatprep.subr.mxu0 0.0
    %1370 = vmatpush2.msra.mxu0 0.0
    %1371 = vmatprep.subr.mxu0 0.0
    %1372 = vmatpush2.msra.mxu0 0.0
    %1373 = vmatprep.subr.mxu0 0.0
    %1374 = vmatpush2.msra.mxu0 0.0
    %1375 = vmatprep.subr.mxu0 0.0
    %1376 = vmatpush2.msra.mxu0 0.0
    %1377 = vmatprep.subr.mxu0 0.0
    %1378 = vmatpush2.msra.mxu0 0.0
    %1379 = vmatprep.subr.mxu0 0.0
    %1380 = vmatpush2.msra.mxu0 0.0
    %1381 = vmatprep.subr.mxu0 0.0
    %1382 = vmatpush2.msra.mxu0 0.0
    %1383 = vmatprep.subr.mxu0 0.0
    %1384 = vmatpush2.msra.mxu0 0.0
    %1385 = vmatprep.mubr.f32.mxu0 0.0
    %1386 = vmatmul.mubr.f32.gmra.mxu0 %v1171
    %v1387 = vpop.f32.mrf.mxu0
    %v1388 = vadd.f32 %v1303, %v1387
    %v1389 = vpop.f32.mrf.mxu0
    %1390 = vmatprep.mubr.f32.mxu0 0.0
    %1391 = vmatmul.mubr.f32.gmra.mxu0 %v1174
    %v1392 = vpop.f32.mrf.mxu0
    %v1393 = vadd.f32 %v1308, %v1392
    %v1394 = vpop.f32.mrf.mxu0
    %1395 = vmatprep.mubr.f32.mxu0 0.0
    %1396 = vmatmul.mubr.f32.gmra.mxu0 %v1177
    %v1397 = vpop.f32.mrf.mxu0
    %v1398 = vadd.f32 %v1313, %v1397
    %v1399 = vpop.f32.mrf.mxu0
    %1400 = vmatprep.mubr.f32.mxu0 0.0
    %1401 = vmatmul.mubr.f32.gmra.mxu0 %v1180
    %v1402 = vpop.f32.mrf.mxu0
    %v1403 = vadd.f32 %v1318, %v1402
    %v1404 = vpop.f32.mrf.mxu0
    %1405 = vdwg.mxu0
    %v1406 = vmax.f32 %v1388, 0.0
    %v1407 = vmax.f32 %v1393, 0.0
    %v1408 = vmax.f32 %v1398, 0.0
    %v1409 = vmax.f32 %v1403, 0.0
    %vm1410 = vcmask 457728
    %1411 = vst.msk [vmem:[%s8] sm:$0xff] %vm1410, %v1406
    %1412 = vst.msk [vmem:[%s8 + $0x8] sm:$0xff] %vm1410, %v1407
    %1413 = vst.msk [vmem:[%s8 + $0x10] sm:$0xff] %vm1410, %v1408
    %vm1414 = vcmask 453632
    %1415 = vst.msk [vmem:[%s8 + $0x18] sm:$0xf] %vm1414, %v1409
    // Predicated region
    $region38: #{decoder_forward.1} parent=1 // pred_check
      _
    $region39: #{decoder_forward.1} parent=1 // pred_check_branch
      %1417 = sbr.rel (0) target = $region41
    $region40: #{decoder_forward.1} parent=1 // pred_region
      _
    $region41: #{decoder_forward.1} parent=1 // pred_fallthru
      _
    // Predicated region
    $region42: #{decoder_forward.1} parent=1 // pred_check
      _
    $region43: #{decoder_forward.1} parent=1 // pred_check_branch
      %1419 = sbr.rel (0) target = $region45
    $region44: #{decoder_forward.1} parent=1 // pred_region
      _
    $region45: #{decoder_forward.1} parent=1 // pred_fallthru
      _
    %1420 = vsyncpa [#allocation8], 1

</llo_original>
